<compile_context>
chip_gen: v7x
topology: tpu7x:2x2x1
jax: 0.10.0
libtpu: 0.0.40
codegen_flags: <defaults>
</compile_context>

<pallas_src>
import numpy as np

import jax
import jax.numpy as jnp
from jax.experimental import pallas as pl
from jax.experimental.pallas import tpu as pltpu

# ---- model hyper-parameters (small but consistent with the module) ----
MAX_LEN = 8
EMBEDDING_DIM = 16
VGENES_DIM = 10
ENCODING_DIM = 30
VOCAB_SIZE = MAX_LEN * 20 + 2 + VGENES_DIM       # = 172 (as computed in __init__)
SEQ = MAX_LEN + 1                                # = 9
D_IN = SEQ * EMBEDDING_DIM                       # = 144
OUT_DIM = MAX_LEN * 21 + VGENES_DIM              # = 178
BATCH = 4

# ---- lane-padded sizes ----
D_IN_P = 256      # 144 -> 256
H1_P = 512        # 500 -> 512
H2_P = 256        # 200 -> 256
ZMULS_P = 128     # fused [mu | log_sigma] / latent width (2*30 -> 128)
LS_OFF = 64       # log_sigma lives in columns [64, 94) of the fused head
OUT_P = 256       # 178 -> 256


def _elu(v):
    # nn.ELU(alpha=1.0); minimum() keeps the dead branch finite.
    return jnp.where(v > 0, v, jnp.exp(jnp.minimum(v, 0.0)) - 1.0)


def _vae_kernel(x_ref, eps_ref,
                w1_ref, b1_ref, w2_ref, b2_ref,
                wmuls_ref, bmuls_ref,
                w3_ref, b3_ref, w4_ref, b4_ref, w5_ref, b5_ref,
                gden_ref,
                out_ref, muls_ref):
    bf16 = jnp.bfloat16
    f32 = jnp.float32

    def dot(a, w_ref):
        # bf16 x bf16 MXU matmul with f32 accumulation.
        return jnp.dot(a.astype(bf16), w_ref[...], preferred_element_type=f32)

    # ---- encoder ----
    # TODO(synk): nn.Dropout(0.2) layers are identity (eval mode); training-mode
    #             stochastic masking is not reproduced.
    x = x_ref[...]                                           # (B, 256)
    h = _elu(dot(x, w1_ref) + b1_ref[...])                   # (B, 512)
    h = _elu(dot(h, w2_ref) + b2_ref[...])                   # (B, 256)

    # ---- fused mu | log_sigma head: mu in cols [0,30), log_sigma in cols [64,94) ----
    muls = dot(h, wmuls_ref) + bmuls_ref[...]                # (B, 128)
    muls_ref[...] = muls

    # ---- reparameterize: z = mu + eps * exp(0.5 * log_sigma) ----
    # roll by 64 lanes aligns log_sigma with mu; lanes >= 30 are garbage but eps is
    # zero there and w3's padded rows are zero, so they never contribute.
    ls_aligned = pltpu.roll(muls, 64, 1)                     # (B, 128)
    z = muls + eps_ref[...] * jnp.exp(0.5 * ls_aligned)      # (B, 128) f32

    # ---- decoder ----
    d = _elu(dot(z, w3_ref) + b3_ref[...])                   # (B, 256)
    d = _elu(dot(d, w4_ref) + b4_ref[...])                   # (B, 512)
    logits = dot(d, w5_ref) + b5_ref[...]                    # (B, 256)

    # ---- lane-dense grouped softmax (segment-sum via one block-diag indicator matmul) ----
    # softmax is invariant to a per-row constant, so one global row max is exact
    # for every group; padding columns (all-zero logits) form their own group so the
    # denominator is never zero.
    m = jnp.max(logits, axis=-1, keepdims=True)              # (B, 1)
    e = jnp.exp(logits - m)                                  # (B, 256) in (0, 1]
    denom = jnp.dot(e.astype(bf16), gden_ref[...],
                    preferred_element_type=f32)              # (B, 256) per-column group sum
    out_ref[...] = e * pl.reciprocal(denom, approx=True)     # (B, 256) lane-dense store


def init_params(key):
    ks = jax.random.split(key, 15)

    def w(k, shape, scale=0.05):
        return (scale * jax.random.normal(k, shape)).astype(jnp.float32)

    def padded_linear(kw, kb, n_in, n_out, p_in, p_out):
        W = jnp.pad(w(kw, (n_in, n_out)), ((0, p_in - n_in), (0, p_out - n_out)))
        b = jnp.pad(w(kb, (1, n_out)), ((0, 0), (0, p_out - n_out)))
        return W.astype(jnp.bfloat16), b.astype(jnp.float32)

    emb = w(ks[0], (VOCAB_SIZE, EMBEDDING_DIM))
    # padding_idx=-1 in PyTorch resolves to row VOCAB_SIZE-1, which is zeroed.
    emb = emb.at[VOCAB_SIZE - 1].set(0.0).astype(jnp.bfloat16)

    w1, b1 = padded_linear(ks[1], ks[2], D_IN, 500, D_IN_P, H1_P)
    w2, b2 = padded_linear(ks[3], ks[4], 500, 200, H1_P, H2_P)

    # fused mu | log_sigma head
    wmu = w(ks[5], (200, ENCODING_DIM)); bmu = w(ks[6], (1, ENCODING_DIM))
    wls = w(ks[7], (200, ENCODING_DIM)); bls = w(ks[8], (1, ENCODING_DIM))
    wmuls = jnp.zeros((H2_P, ZMULS_P), jnp.float32)
    wmuls = wmuls.at[:200, :ENCODING_DIM].set(wmu)
    wmuls = wmuls.at[:200, LS_OFF:LS_OFF + ENCODING_DIM].set(wls).astype(jnp.bfloat16)
    bmuls = jnp.zeros((1, ZMULS_P), jnp.float32)
    bmuls = bmuls.at[:, :ENCODING_DIM].set(bmu)
    bmuls = bmuls.at[:, LS_OFF:LS_OFF + ENCODING_DIM].set(bls)

    w3, b3 = padded_linear(ks[9], ks[10], ENCODING_DIM, 200, ZMULS_P, H2_P)
    w4, b4 = padded_linear(ks[11], ks[12], 200, 500, H2_P, H1_P)
    w5, b5 = padded_linear(ks[13], ks[14], 500, OUT_DIM, H1_P, OUT_P)

    # block-diagonal group-indicator matrix for the segmented softmax denominator:
    # Gden[i, j] = 1 iff columns i and j belong to the same softmax group.
    col = np.arange(OUT_P)
    grp = np.where(col < MAX_LEN * 21, col // 21,
                   np.where(col < OUT_DIM, MAX_LEN, MAX_LEN + 1)).astype(np.int32)
    gden = (grp[:, None] == grp[None, :]).astype(np.float32)   # 0/1 -> exact in bf16

    return dict(embedding=emb,
                w1=w1, b1=b1, w2=w2, b2=b2,
                wmuls=wmuls, bmuls=bmuls,
                w3=w3, b3=b3, w4=w4, b4=b4, w5=w5, b5=b5,
                gden=jnp.asarray(gden, dtype=jnp.bfloat16))


def _prepare_inputs(params, padded_input, eps):
    idx = padded_input.astype(jnp.int32)
    b = idx.shape[0]
    b_pad = ((max(b, 8) + 7) // 8) * 8
    # embedding lookup + flatten (plain-XLA glue; gather), then pad to lane-dense tile
    x_emb = jnp.take(params["embedding"], idx, axis=0).reshape(b, D_IN)
    x_pad = jnp.pad(x_emb, ((0, b_pad - b), (0, D_IN_P - D_IN)))
    eps_pad = jnp.pad(eps.astype(jnp.float32),
                      ((0, b_pad - b), (0, ZMULS_P - ENCODING_DIM)))
    return x_pad, eps_pad, b


def model2_forward(params, padded_input, eps):
    """Returns (output, x_mu, x_log_sigma) matching Model2.forward semantics."""
    x_pad, eps_pad, b = _prepare_inputs(params, padded_input, eps)
    b_pad = x_pad.shape[0]

    args = (x_pad, eps_pad,
            params["w1"], params["b1"], params["w2"], params["b2"],
            params["wmuls"], params["bmuls"],
            params["w3"], params["b3"], params["w4"], params["b4"],
            params["w5"], params["b5"],
            params["gden"])

    vspec = pl.BlockSpec(memory_space=pltpu.MemorySpace.VMEM)

    out, muls = pl.pallas_call(
        _vae_kernel,
        out_shape=(
            jax.ShapeDtypeStruct((b_pad, OUT_P), jnp.float32),     # padded softmax output
            jax.ShapeDtypeStruct((b_pad, ZMULS_P), jnp.float32),   # fused [mu | log_sigma]
        ),
        in_specs=[vspec] * len(args),
        out_specs=(vspec, vspec),
    )(*args)

    output = out[:b, :OUT_DIM]
    x_mu = muls[:b, :ENCODING_DIM]
    x_log_sigma = muls[:b, LS_OFF:LS_OFF + ENCODING_DIM]
    return output, x_mu, x_log_sigma


def _reference_forward(params, padded_input, eps):
    """Pure-JAX mirror of the padded kernel math (exact division instead of approx recip)."""
    bf16 = jnp.bfloat16
    f32 = jnp.float32
    x_pad, eps_pad, b = _prepare_inputs(params, padded_input, eps)

    def dot(a, w):
        return jnp.dot(a.astype(bf16), w, preferred_element_type=f32)

    h = _elu(dot(x_pad, params["w1"]) + params["b1"])
    h = _elu(dot(h, params["w2"]) + params["b2"])
    muls = dot(h, params["wmuls"]) + params["bmuls"]
    ls_aligned = jnp.roll(muls, 64, axis=1)
    z = muls + eps_pad * jnp.exp(0.5 * ls_aligned)
    d = _elu(dot(z, params["w3"]) + params["b3"])
    d = _elu(dot(d, params["w4"]) + params["b4"])
    logits = dot(d, params["w5"]) + params["b5"]
    m = jnp.max(logits, axis=-1, keepdims=True)
    e = jnp.exp(logits - m)
    denom = jnp.dot(e.astype(bf16), params["gden"], preferred_element_type=f32)
    out = e / denom
    return (out[:b, :OUT_DIM], muls[:b, :ENCODING_DIM],
            muls[:b, LS_OFF:LS_OFF + ENCODING_DIM])


if __name__ == "__main__":
    key = jax.random.PRNGKey(0)
    pk, ik, ek = jax.random.split(key, 3)

    params = init_params(pk)
    padded_input = jax.random.randint(ik, (BATCH, SEQ), 0, VOCAB_SIZE, dtype=jnp.int32)
    # eps for reparameterization (torch.randn_like) generated deterministically here
    eps = jax.random.normal(ek, (BATCH, ENCODING_DIM), dtype=jnp.float32)

    out, x_mu, x_log_sigma = model2_forward(params, padded_input, eps)
    jax.block_until_ready((out, x_mu, x_log_sigma))

    assert out.shape == (BATCH, OUT_DIM)
    assert x_mu.shape == (BATCH, ENCODING_DIM)
    assert x_log_sigma.shape == (BATCH, ENCODING_DIM)
    assert bool(jnp.all(jnp.isfinite(out)))

    # every softmax group sums to ~1 -> each output row sums to max_len + 1 = 9
    row_sums = jnp.sum(out, axis=1)
    assert jnp.allclose(row_sums, float(MAX_LEN + 1), atol=1e-1), row_sums

    # compare against a pure-JAX reference of the same padded bf16 computation
    ref_out, ref_mu, ref_ls = _reference_forward(params, padded_input, eps)
    assert jnp.allclose(out, ref_out, atol=1e-2), float(jnp.max(jnp.abs(out - ref_out)))
    assert jnp.allclose(x_mu, ref_mu, atol=1e-2)
    assert jnp.allclose(x_log_sigma, ref_ls, atol=1e-2)

    print("KERNEL_OK")
</pallas_src>

<mosaic_0001>
module attributes {stable_mosaic.version = 11 : i64} {
  func.func @_vae_kernel(%arg0: memref<8x256xbf16, #tpu.memory_space<vmem>>, %arg1: memref<8x128xf32, #tpu.memory_space<vmem>>, %arg2: memref<256x512xbf16, #tpu.memory_space<vmem>>, %arg3: memref<1x512xf32, #tpu.memory_space<vmem>>, %arg4: memref<512x256xbf16, #tpu.memory_space<vmem>>, %arg5: memref<1x256xf32, #tpu.memory_space<vmem>>, %arg6: memref<256x128xbf16, #tpu.memory_space<vmem>>, %arg7: memref<1x128xf32, #tpu.memory_space<vmem>>, %arg8: memref<128x256xbf16, #tpu.memory_space<vmem>>, %arg9: memref<1x256xf32, #tpu.memory_space<vmem>>, %arg10: memref<256x512xbf16, #tpu.memory_space<vmem>>, %arg11: memref<1x512xf32, #tpu.memory_space<vmem>>, %arg12: memref<512x256xbf16, #tpu.memory_space<vmem>>, %arg13: memref<1x256xf32, #tpu.memory_space<vmem>>, %arg14: memref<256x256xbf16, #tpu.memory_space<vmem>>, %arg15: memref<8x256xf32, #tpu.memory_space<vmem>>, %arg16: memref<8x128xf32, #tpu.memory_space<vmem>>) attributes {dimension_semantics = [], scalar_prefetch = 0 : i64, scratch_operands = 0 : i64, tpu.core_type = #tpu.core_type<tc>} {
    %c0 = arith.constant 0 : index
    %c0_0 = arith.constant 0 : index
    %0 = vector.load %arg0[%c0, %c0_0] : memref<8x256xbf16, #tpu.memory_space<vmem>>, vector<8x256xbf16>
    %c0_1 = arith.constant 0 : index
    %c0_2 = arith.constant 0 : index
    %1 = vector.load %arg2[%c0_1, %c0_2] : memref<256x512xbf16, #tpu.memory_space<vmem>>, vector<256x512xbf16>
    %cst = arith.constant dense<0.000000e+00> : vector<8x512xf32>
    %2 = tpu.matmul %0, %1, %cst {dimension_numbers = #tpu.dot_dimension_numbers<[1], [0], [0], [1], [0, 0, 1, 1], [], []>} : vector<8x256xbf16>, vector<256x512xbf16>, vector<8x512xf32> -> vector<8x512xf32>
    %c0_3 = arith.constant 0 : index
    %c0_4 = arith.constant 0 : index
    %3 = vector.load %arg3[%c0_3, %c0_4] : memref<1x512xf32, #tpu.memory_space<vmem>>, vector<1x512xf32>
    %4 = vector.broadcast %3 : vector<1x512xf32> to vector<8x512xf32>
    %5 = arith.addf %2, %4 : vector<8x512xf32>
    %cst_5 = arith.constant 0.000000e+00 : f32
    %6 = vector.broadcast %cst_5 : f32 to vector<8x512xf32>
    %7 = arith.cmpf ogt, %5, %6 : vector<8x512xf32>
    %cst_6 = arith.constant 0.000000e+00 : f32
    %8 = vector.broadcast %cst_6 : f32 to vector<8x512xf32>
    %9 = arith.minimumf %5, %8 : vector<8x512xf32>
    %10 = math.exp %9 : vector<8x512xf32>
    %cst_7 = arith.constant 1.000000e+00 : f32
    %11 = vector.broadcast %cst_7 : f32 to vector<8x512xf32>
    %12 = arith.subf %10, %11 : vector<8x512xf32>
    %13 = arith.select %7, %5, %12 : vector<8x512xi1>, vector<8x512xf32>
    %14 = arith.truncf %13 : vector<8x512xf32> to vector<8x512xbf16>
    %c0_8 = arith.constant 0 : index
    %c0_9 = arith.constant 0 : index
    %15 = vector.load %arg4[%c0_8, %c0_9] : memref<512x256xbf16, #tpu.memory_space<vmem>>, vector<512x256xbf16>
    %cst_10 = arith.constant dense<0.000000e+00> : vector<8x256xf32>
    %16 = tpu.matmul %14, %15, %cst_10 {dimension_numbers = #tpu.dot_dimension_numbers<[1], [0], [0], [1], [0, 0, 1, 1], [], []>} : vector<8x512xbf16>, vector<512x256xbf16>, vector<8x256xf32> -> vector<8x256xf32>
    %c0_11 = arith.constant 0 : index
    %c0_12 = arith.constant 0 : index
    %17 = vector.load %arg5[%c0_11, %c0_12] : memref<1x256xf32, #tpu.memory_space<vmem>>, vector<1x256xf32>
    %18 = vector.broadcast %17 : vector<1x256xf32> to vector<8x256xf32>
    %19 = arith.addf %16, %18 : vector<8x256xf32>
    %cst_13 = arith.constant 0.000000e+00 : f32
    %20 = vector.broadcast %cst_13 : f32 to vector<8x256xf32>
    %21 = arith.cmpf ogt, %19, %20 : vector<8x256xf32>
    %cst_14 = arith.constant 0.000000e+00 : f32
    %22 = vector.broadcast %cst_14 : f32 to vector<8x256xf32>
    %23 = arith.minimumf %19, %22 : vector<8x256xf32>
    %24 = math.exp %23 : vector<8x256xf32>
    %cst_15 = arith.constant 1.000000e+00 : f32
    %25 = vector.broadcast %cst_15 : f32 to vector<8x256xf32>
    %26 = arith.subf %24, %25 : vector<8x256xf32>
    %27 = arith.select %21, %19, %26 : vector<8x256xi1>, vector<8x256xf32>
    %28 = arith.truncf %27 : vector<8x256xf32> to vector<8x256xbf16>
    %c0_16 = arith.constant 0 : index
    %c0_17 = arith.constant 0 : index
    %29 = vector.load %arg6[%c0_16, %c0_17] : memref<256x128xbf16, #tpu.memory_space<vmem>>, vector<256x128xbf16>
    %cst_18 = arith.constant dense<0.000000e+00> : vector<8x128xf32>
    %30 = tpu.matmul %28, %29, %cst_18 {dimension_numbers = #tpu.dot_dimension_numbers<[1], [0], [0], [1], [0, 0, 1, 1], [], []>} : vector<8x256xbf16>, vector<256x128xbf16>, vector<8x128xf32> -> vector<8x128xf32>
    %c0_19 = arith.constant 0 : index
    %c0_20 = arith.constant 0 : index
    %31 = vector.load %arg7[%c0_19, %c0_20] : memref<1x128xf32, #tpu.memory_space<vmem>>, vector<1x128xf32>
    %32 = vector.broadcast %31 : vector<1x128xf32> to vector<8x128xf32>
    %33 = arith.addf %30, %32 : vector<8x128xf32>
    %c0_21 = arith.constant 0 : index
    %c0_22 = arith.constant 0 : index
    %34 = vector.load %arg16[%c0_21, %c0_22] : memref<8x128xf32, #tpu.memory_space<vmem>>, vector<8x128xf32>
    tpu.vector_store %arg16[%c0_21, %c0_22], %33 {strides = array<i32>} : memref<8x128xf32, #tpu.memory_space<vmem>>, vector<8x128xf32>,
    %c64_i32 = arith.constant 64 : i32
    %35 = tpu.dynamic_rotate %33 by %c64_i32 dim 1 : vector<8x128xf32>, i32 -> vector<8x128xf32>
    %c0_23 = arith.constant 0 : index
    %c0_24 = arith.constant 0 : index
    %36 = vector.load %arg1[%c0_23, %c0_24] : memref<8x128xf32, #tpu.memory_space<vmem>>, vector<8x128xf32>
    %cst_25 = arith.constant 5.000000e-01 : f32
    %37 = vector.broadcast %cst_25 : f32 to vector<8x128xf32>
    %38 = arith.mulf %37, %35 : vector<8x128xf32>
    %39 = math.exp %38 : vector<8x128xf32>
    %40 = arith.mulf %36, %39 : vector<8x128xf32>
    %41 = arith.addf %33, %40 : vector<8x128xf32>
    %42 = arith.truncf %41 : vector<8x128xf32> to vector<8x128xbf16>
    %c0_26 = arith.constant 0 : index
    %c0_27 = arith.constant 0 : index
    %43 = vector.load %arg8[%c0_26, %c0_27] : memref<128x256xbf16, #tpu.memory_space<vmem>>, vector<128x256xbf16>
    %cst_28 = arith.constant dense<0.000000e+00> : vector<8x256xf32>
    %44 = tpu.matmul %42, %43, %cst_28 {dimension_numbers = #tpu.dot_dimension_numbers<[1], [0], [0], [1], [0, 0, 1, 1], [], []>} : vector<8x128xbf16>, vector<128x256xbf16>, vector<8x256xf32> -> vector<8x256xf32>
    %c0_29 = arith.constant 0 : index
    %c0_30 = arith.constant 0 : index
    %45 = vector.load %arg9[%c0_29, %c0_30] : memref<1x256xf32, #tpu.memory_space<vmem>>, vector<1x256xf32>
    %46 = vector.broadcast %45 : vector<1x256xf32> to vector<8x256xf32>
    %47 = arith.addf %44, %46 : vector<8x256xf32>
    %cst_31 = arith.constant 0.000000e+00 : f32
    %48 = vector.broadcast %cst_31 : f32 to vector<8x256xf32>
    %49 = arith.cmpf ogt, %47, %48 : vector<8x256xf32>
    %cst_32 = arith.constant 0.000000e+00 : f32
    %50 = vector.broadcast %cst_32 : f32 to vector<8x256xf32>
    %51 = arith.minimumf %47, %50 : vector<8x256xf32>
    %52 = math.exp %51 : vector<8x256xf32>
    %cst_33 = arith.constant 1.000000e+00 : f32
    %53 = vector.broadcast %cst_33 : f32 to vector<8x256xf32>
    %54 = arith.subf %52, %53 : vector<8x256xf32>
    %55 = arith.select %49, %47, %54 : vector<8x256xi1>, vector<8x256xf32>
    %56 = arith.truncf %55 : vector<8x256xf32> to vector<8x256xbf16>
    %c0_34 = arith.constant 0 : index
    %c0_35 = arith.constant 0 : index
    %57 = vector.load %arg10[%c0_34, %c0_35] : memref<256x512xbf16, #tpu.memory_space<vmem>>, vector<256x512xbf16>
    %cst_36 = arith.constant dense<0.000000e+00> : vector<8x512xf32>
    %58 = tpu.matmul %56, %57, %cst_36 {dimension_numbers = #tpu.dot_dimension_numbers<[1], [0], [0], [1], [0, 0, 1, 1], [], []>} : vector<8x256xbf16>, vector<256x512xbf16>, vector<8x512xf32> -> vector<8x512xf32>
    %c0_37 = arith.constant 0 : index
    %c0_38 = arith.constant 0 : index
    %59 = vector.load %arg11[%c0_37, %c0_38] : memref<1x512xf32, #tpu.memory_space<vmem>>, vector<1x512xf32>
    %60 = vector.broadcast %59 : vector<1x512xf32> to vector<8x512xf32>
    %61 = arith.addf %58, %60 : vector<8x512xf32>
    %cst_39 = arith.constant 0.000000e+00 : f32
    %62 = vector.broadcast %cst_39 : f32 to vector<8x512xf32>
    %63 = arith.cmpf ogt, %61, %62 : vector<8x512xf32>
    %cst_40 = arith.constant 0.000000e+00 : f32
    %64 = vector.broadcast %cst_40 : f32 to vector<8x512xf32>
    %65 = arith.minimumf %61, %64 : vector<8x512xf32>
    %66 = math.exp %65 : vector<8x512xf32>
    %cst_41 = arith.constant 1.000000e+00 : f32
    %67 = vector.broadcast %cst_41 : f32 to vector<8x512xf32>
    %68 = arith.subf %66, %67 : vector<8x512xf32>
    %69 = arith.select %63, %61, %68 : vector<8x512xi1>, vector<8x512xf32>
    %70 = arith.truncf %69 : vector<8x512xf32> to vector<8x512xbf16>
    %c0_42 = arith.constant 0 : index
    %c0_43 = arith.constant 0 : index
    %71 = vector.load %arg12[%c0_42, %c0_43] : memref<512x256xbf16, #tpu.memory_space<vmem>>, vector<512x256xbf16>
    %cst_44 = arith.constant dense<0.000000e+00> : vector<8x256xf32>
    %72 = tpu.matmul %70, %71, %cst_44 {dimension_numbers = #tpu.dot_dimension_numbers<[1], [0], [0], [1], [0, 0, 1, 1], [], []>} : vector<8x512xbf16>, vector<512x256xbf16>, vector<8x256xf32> -> vector<8x256xf32>
    %c0_45 = arith.constant 0 : index
    %c0_46 = arith.constant 0 : index
    %73 = vector.load %arg13[%c0_45, %c0_46] : memref<1x256xf32, #tpu.memory_space<vmem>>, vector<1x256xf32>
    %74 = vector.broadcast %73 : vector<1x256xf32> to vector<8x256xf32>
    %75 = arith.addf %72, %74 : vector<8x256xf32>
    %cst_47 = arith.constant dense<0xFF800000> : vector<8xf32>
    %76 = vector.multi_reduction <maximumf>, %75, %cst_47 [1] : vector<8x256xf32> to vector<8xf32>
    %77 = vector.shape_cast %76 : vector<8xf32> to vector<8x1xf32>
    %78 = vector.broadcast %77 : vector<8x1xf32> to vector<8x256xf32>
    %79 = arith.subf %75, %78 : vector<8x256xf32>
    %80 = math.exp %79 : vector<8x256xf32>
    %81 = arith.truncf %80 : vector<8x256xf32> to vector<8x256xbf16>
    %c0_48 = arith.constant 0 : index
    %c0_49 = arith.constant 0 : index
    %82 = vector.load %arg14[%c0_48, %c0_49] : memref<256x256xbf16, #tpu.memory_space<vmem>>, vector<256x256xbf16>
    %cst_50 = arith.constant dense<0.000000e+00> : vector<8x256xf32>
    %83 = tpu.matmul %81, %82, %cst_50 {dimension_numbers = #tpu.dot_dimension_numbers<[1], [0], [0], [1], [0, 0, 1, 1], [], []>} : vector<8x256xbf16>, vector<256x256xbf16>, vector<8x256xf32> -> vector<8x256xf32>
    %84 = tpu.reciprocal %83 {approx = true} : vector<8x256xf32> -> vector<8x256xf32>
    %85 = arith.mulf %80, %84 : vector<8x256xf32>
    %c0_51 = arith.constant 0 : index
    %c0_52 = arith.constant 0 : index
    %86 = vector.load %arg15[%c0_51, %c0_52] : memref<8x256xf32, #tpu.memory_space<vmem>>, vector<8x256xf32>
    tpu.vector_store %arg15[%c0_51, %c0_52], %85 {strides = array<i32>} : memref<8x256xf32, #tpu.memory_space<vmem>>, vector<8x256xf32>,
    return
  }
}

</mosaic_0001>

<llo_original>
// kernel: tpu_custom_call.1
$region0: #{tpu_custom_call.1}
  #allocation0 [shape = 'u32[]', space=smem, size = 0x4, offset = 0x4, fixed_abs, tag = 'smem constant byte address 0x4 - core index']
  #allocation1 [shape = 'u32[144,128]{1,0:T(1,128)}', space=vmem, size = 0x12000, scoped, tag = 'internal scratch']
  %s0 = inlined_call_operand.hbm [shape: bf16[8,256], index: 0, kind: input, shape index: {}]
  %s1 = inlined_call_operand.hbm [shape: f32[8,128], index: 1, kind: input, shape index: {}]
  %s2 = inlined_call_operand.hbm [shape: bf16[256,512], index: 2, kind: input, shape index: {}]
  %s3 = inlined_call_operand.vmem [shape: f32[1,512], index: 3, kind: input, shape index: {}]
  %s4 = inlined_call_operand.hbm [shape: bf16[512,256], index: 4, kind: input, shape index: {}]
  %s5 = inlined_call_operand.vmem [shape: f32[1,256], index: 5, kind: input, shape index: {}]
  %s6 = inlined_call_operand.hbm [shape: bf16[256,128], index: 6, kind: input, shape index: {}]
  %s7 = inlined_call_operand.vmem [shape: f32[1,128], index: 7, kind: input, shape index: {}]
  %s8 = inlined_call_operand.hbm [shape: bf16[128,256], index: 8, kind: input, shape index: {}]
  %s9 = inlined_call_operand.vmem [shape: f32[1,256], index: 9, kind: input, shape index: {}]
  %s10 = inlined_call_operand.hbm [shape: bf16[256,512], index: 10, kind: input, shape index: {}]
  %s11 = inlined_call_operand.vmem [shape: f32[1,512], index: 11, kind: input, shape index: {}]
  %s12 = inlined_call_operand.hbm [shape: bf16[512,256], index: 12, kind: input, shape index: {}]
  %s13 = inlined_call_operand.vmem [shape: f32[1,256], index: 13, kind: input, shape index: {}]
  %s14 = inlined_call_operand.hbm [shape: bf16[256,256], index: 14, kind: input, shape index: {}]
  %s15 = inlined_call_operand.hbm [shape: f32[8,256], index: 15, kind: output, shape index: {0}]
  %s16 = inlined_call_operand.hbm [shape: f32[8,128], index: 16, kind: output, shape index: {1}]
  %17 = xla_tuple %s15, %s16
  %s18 = sld [smem:[#allocation0]]
  $region114: #{tpu_custom_call.1} parent=0
    _
  %s20 = ssub.s32 1, %s18
  %s21 = scalar_select 0, %s20, %s18
  $region1: #{tpu_custom_call.1} parent=0
    #allocation2 [shape = 'u8[4096]{0}', space=vmem, size = 0x1000, scoped, tag = 'input window, operand 0, single buffered']
    #allocation3 [shape = 's32[1]{0}', space=sflag, size = 0x4, scoped, tag = 'scoped memory for tpu_custom_call.1']
    #allocation4 [shape = 's32[1]{0}', space=sflag, size = 0x4, scoped, tag = 'scoped memory for tpu_custom_call.1']
    #allocation5 [shape = 'u8[4096]{0}', space=vmem, size = 0x1000, scoped, tag = 'input window, operand 1, single buffered']
    #allocation6 [shape = 's32[1]{0}', space=sflag, size = 0x4, scoped, tag = 'scoped memory for tpu_custom_call.1']
    #allocation7 [shape = 'u8[262144]{0}', space=vmem, size = 0x40000, scoped, tag = 'input window, operand 2, single buffered']
    #allocation8 [shape = 'u8[262144]{0}', space=vmem, size = 0x40000, scoped, tag = 'input window, operand 4, single buffered']
    #allocation9 [shape = 's32[1]{0}', space=sflag, size = 0x4, scoped, tag = 'scoped memory for tpu_custom_call.1']
    #allocation10 [shape = 'u8[65536]{0}', space=vmem, size = 0x10000, scoped, tag = 'input window, operand 6, single buffered']
    #allocation11 [shape = 'u8[65536]{0}', space=vmem, size = 0x10000, scoped, tag = 'input window, operand 8, single buffered']
    #allocation12 [shape = 's32[1]{0}', space=sflag, size = 0x4, scoped, tag = 'scoped memory for tpu_custom_call.1']
    #allocation13 [shape = 'u8[262144]{0}', space=vmem, size = 0x40000, scoped, tag = 'input window, operand 10, single buffered']
    #allocation14 [shape = 'u8[262144]{0}', space=vmem, size = 0x40000, scoped, tag = 'input window, operand 12, single buffered']
    #allocation15 [shape = 's32[1]{0}', space=sflag, size = 0x4, scoped, tag = 'scoped memory for tpu_custom_call.1']
    #allocation16 [shape = 'u8[131072]{0}', space=vmem, size = 0x20000, scoped, tag = 'input window, operand 14, single buffered']
    #allocation17 [shape = 'u8[8192]{0}', space=vmem, size = 0x2000, scoped, tag = 'output window, operand 0, single buffered']
    #allocation18 [shape = 'u8[4096]{0}', space=vmem, size = 0x1000, scoped, tag = 'output window, operand 1, single buffered']
    #allocation19 [shape = 's32[1]{0}', space=sflag, size = 0x4, scoped, tag = 'scoped memory for tpu_custom_call.1']
    %22 = vsyncpa [#allocation3], 0
    %23 = vsyncpa [#allocation6], 0
    %24 = vsyncpa [#allocation9], 0
    %25 = vsyncpa [#allocation12], 0
    %26 = vsyncpa [#allocation15], 0
    %27 = vsyncpa [#allocation4], 0
    %28 = vsyncpa [#allocation19], 0
    // Predicated region
    $region2: #{tpu_custom_call.1} parent=1 // pred_check
      _
    $region3: #{tpu_custom_call.1} parent=1 // pred_check_branch
      %30 = sbr.rel (0) target = $region5
    $region4: #{tpu_custom_call.1} parent=1 // pred_region
      %s32 = ssub.s32 128, 128
      %33 = vsyncadd [#allocation3], %s32
      %s35 = sshll.u32 [#allocation2], 4
      %s36 = int_to_ptr.vmem [resolvable:$true] %s35
      %38 = dma.hbm_to_vmem [thread:$0]  %s0, 128, %s36, [#allocation3]
    $region5: #{tpu_custom_call.1} parent=1 // pred_fallthru
      _
    // Predicated region
    $region6: #{tpu_custom_call.1} parent=1 // pred_check
      _
    $region7: #{tpu_custom_call.1} parent=1 // pred_check_branch
      %40 = sbr.rel (0) target = $region9
    $region8: #{tpu_custom_call.1} parent=1 // pred_region
      %s42 = ssub.s32 128, 128
      %43 = vsyncadd [#allocation6], %s42
      %s45 = sshll.u32 [#allocation5], 4
      %s46 = int_to_ptr.vmem [resolvable:$true] %s45
      %48 = dma.hbm_to_vmem [thread:$0]  %s1, 128, %s46, [#allocation6]
    $region9: #{tpu_custom_call.1} parent=1 // pred_fallthru
      _
    // Predicated region
    $region10: #{tpu_custom_call.1} parent=1 // pred_check
      _
    $region11: #{tpu_custom_call.1} parent=1 // pred_check_branch
      %50 = sbr.rel (0) target = $region13
    $region12: #{tpu_custom_call.1} parent=1 // pred_region
      %s52 = ssub.s32 8192, 8192
      %53 = vsyncadd [#allocation6], %s52
      %s54 = sshll.u32 [#allocation7], 4
      %s55 = int_to_ptr.vmem [resolvable:$true] %s54
      %60 = dma.hbm_to_vmem [thread:$0]  %s2, 8192, %s55, [#allocation6], 256, 256, 16
    $region13: #{tpu_custom_call.1} parent=1 // pred_fallthru
      _
    // Predicated region
    $region14: #{tpu_custom_call.1} parent=1 // pred_check
      _
    $region15: #{tpu_custom_call.1} parent=1 // pred_check_branch
      %62 = sbr.rel (0) target = $region17
    $region16: #{tpu_custom_call.1} parent=1 // pred_region
      _
    $region17: #{tpu_custom_call.1} parent=1 // pred_fallthru
      _
    // Predicated region
    $region18: #{tpu_custom_call.1} parent=1 // pred_check
      _
    $region19: #{tpu_custom_call.1} parent=1 // pred_check_branch
      %64 = sbr.rel (0) target = $region21
    $region20: #{tpu_custom_call.1} parent=1 // pred_region
      %s66 = ssub.s32 8192, 8192
      %67 = vsyncadd [#allocation9], %s66
      %s68 = sshll.u32 [#allocation8], 4
      %s69 = int_to_ptr.vmem [resolvable:$true] %s68
      %74 = dma.hbm_to_vmem [thread:$0]  %s4, 8192, %s69, [#allocation9], 128, 128, 8
    $region21: #{tpu_custom_call.1} parent=1 // pred_fallthru
      _
    // Predicated region
    $region22: #{tpu_custom_call.1} parent=1 // pred_check
      _
    $region23: #{tpu_custom_call.1} parent=1 // pred_check_branch
      %76 = sbr.rel (0) target = $region25
    $region24: #{tpu_custom_call.1} parent=1 // pred_region
      _
    $region25: #{tpu_custom_call.1} parent=1 // pred_fallthru
      _
    // Predicated region
    $region26: #{tpu_custom_call.1} parent=1 // pred_check
      _
    $region27: #{tpu_custom_call.1} parent=1 // pred_check_branch
      %78 = sbr.rel (0) target = $region29
    $region28: #{tpu_custom_call.1} parent=1 // pred_region
      %s80 = ssub.s32 2048, 2048
      %81 = vsyncadd [#allocation9], %s80
      %s82 = sshll.u32 [#allocation10], 4
      %s83 = int_to_ptr.vmem [resolvable:$true] %s82
      %88 = dma.hbm_to_vmem [thread:$0]  %s6, 2048, %s83, [#allocation9], 64, 64, 4
    $region29: #{tpu_custom_call.1} parent=1 // pred_fallthru
      _
    // Predicated region
    $region30: #{tpu_custom_call.1} parent=1 // pred_check
      _
    $region31: #{tpu_custom_call.1} parent=1 // pred_check_branch
      %90 = sbr.rel (0) target = $region33
    $region32: #{tpu_custom_call.1} parent=1 // pred_region
      _
    $region33: #{tpu_custom_call.1} parent=1 // pred_fallthru
      _
    // Predicated region
    $region34: #{tpu_custom_call.1} parent=1 // pred_check
      _
    $region35: #{tpu_custom_call.1} parent=1 // pred_check_branch
      %92 = sbr.rel (0) target = $region37
    $region36: #{tpu_custom_call.1} parent=1 // pred_region
      %s94 = ssub.s32 2048, 2048
      %95 = vsyncadd [#allocation12], %s94
      %s96 = sshll.u32 [#allocation11], 4
      %s97 = int_to_ptr.vmem [resolvable:$true] %s96
      %102 = dma.hbm_to_vmem [thread:$0]  %s8, 2048, %s97, [#allocation12], 128, 128, 8
    $region37: #{tpu_custom_call.1} parent=1 // pred_fallthru
      _
    // Predicated region
    $region38: #{tpu_custom_call.1} parent=1 // pred_check
      _
    $region39: #{tpu_custom_call.1} parent=1 // pred_check_branch
      %104 = sbr.rel (0) target = $region41
    $region40: #{tpu_custom_call.1} parent=1 // pred_region
      _
    $region41: #{tpu_custom_call.1} parent=1 // pred_fallthru
      _
    // Predicated region
    $region42: #{tpu_custom_call.1} parent=1 // pred_check
      _
    $region43: #{tpu_custom_call.1} parent=1 // pred_check_branch
      %106 = sbr.rel (0) target = $region45
    $region44: #{tpu_custom_call.1} parent=1 // pred_region
      %s108 = ssub.s32 8192, 8192
      %109 = vsyncadd [#allocation12], %s108
      %s110 = sshll.u32 [#allocation13], 4
      %s111 = int_to_ptr.vmem [resolvable:$true] %s110
      %116 = dma.hbm_to_vmem [thread:$0]  %s10, 8192, %s111, [#allocation12], 256, 256, 16
    $region45: #{tpu_custom_call.1} parent=1 // pred_fallthru
      _
    // Predicated region
    $region46: #{tpu_custom_call.1} parent=1 // pred_check
      _
    $region47: #{tpu_custom_call.1} parent=1 // pred_check_branch
      %118 = sbr.rel (0) target = $region49
    $region48: #{tpu_custom_call.1} parent=1 // pred_region
      _
    $region49: #{tpu_custom_call.1} parent=1 // pred_fallthru
      _
    // Predicated region
    $region50: #{tpu_custom_call.1} parent=1 // pred_check
      _
    $region51: #{tpu_custom_call.1} parent=1 // pred_check_branch
      %120 = sbr.rel (0) target = $region53
    $region52: #{tpu_custom_call.1} parent=1 // pred_region
      %s122 = ssub.s32 8192, 8192
      %123 = vsyncadd [#allocation15], %s122
      %s124 = sshll.u32 [#allocation14], 4
      %s125 = int_to_ptr.vmem [resolvable:$true] %s124
      %130 = dma.hbm_to_vmem [thread:$0]  %s12, 8192, %s125, [#allocation15], 128, 128, 8
    $region53: #{tpu_custom_call.1} parent=1 // pred_fallthru
      _
    // Predicated region
    $region54: #{tpu_custom_call.1} parent=1 // pred_check
      _
    $region55: #{tpu_custom_call.1} parent=1 // pred_check_branch
      %132 = sbr.rel (0) target = $region57
    $region56: #{tpu_custom_call.1} parent=1 // pred_region
      _
    $region57: #{tpu_custom_call.1} parent=1 // pred_fallthru
      _
    // Predicated region
    $region58: #{tpu_custom_call.1} parent=1 // pred_check
      _
    $region59: #{tpu_custom_call.1} parent=1 // pred_check_branch
      %134 = sbr.rel (0) target = $region61
    $region60: #{tpu_custom_call.1} parent=1 // pred_region
      %s136 = ssub.s32 4096, 4096
      %137 = vsyncadd [#allocation15], %s136
      %s138 = sshll.u32 [#allocation16], 4
      %s139 = int_to_ptr.vmem [resolvable:$true] %s138
      %144 = dma.hbm_to_vmem [thread:$0]  %s14, 4096, %s139, [#allocation15], 128, 128, 8
    $region61: #{tpu_custom_call.1} parent=1 // pred_fallthru
      _
    // Predicated region
    $region62: #{tpu_custom_call.1} parent=1 // pred_check
      _
    $region63: #{tpu_custom_call.1} parent=1 // pred_check_branch
      %146 = sbr.rel (0) target = $region65
    $region64: #{tpu_custom_call.1} parent=1 // pred_region
      %147 = dma.done [#allocation3], 128
    $region65: #{tpu_custom_call.1} parent=1 // pred_fallthru
      _
    // Predicated region
    $region66: #{tpu_custom_call.1} parent=1 // pred_check
      _
    $region67: #{tpu_custom_call.1} parent=1 // pred_check_branch
      %149 = sbr.rel (0) target = $region69
    $region68: #{tpu_custom_call.1} parent=1 // pred_region
      %150 = dma.done [#allocation6], 128
    $region69: #{tpu_custom_call.1} parent=1 // pred_fallthru
      _
    // Predicated region
    $region70: #{tpu_custom_call.1} parent=1 // pred_check
      _
    $region71: #{tpu_custom_call.1} parent=1 // pred_check_branch
      %152 = sbr.rel (0) target = $region73
    $region72: #{tpu_custom_call.1} parent=1 // pred_region
      %153 = dma.done [#allocation6], 8192
    $region73: #{tpu_custom_call.1} parent=1 // pred_fallthru
      _
    // Predicated region
    $region74: #{tpu_custom_call.1} parent=1 // pred_check
      _
    $region75: #{tpu_custom_call.1} parent=1 // pred_check_branch
      %155 = sbr.rel (0) target = $region77
    $region76: #{tpu_custom_call.1} parent=1 // pred_region
      %156 = dma.done [#allocation9], 8192
    $region77: #{tpu_custom_call.1} parent=1 // pred_fallthru
      _
    // Predicated region
    $region78: #{tpu_custom_call.1} parent=1 // pred_check
      _
    $region79: #{tpu_custom_call.1} parent=1 // pred_check_branch
      %158 = sbr.rel (0) target = $region81
    $region80: #{tpu_custom_call.1} parent=1 // pred_region
      %159 = dma.done [#allocation9], 2048
    $region81: #{tpu_custom_call.1} parent=1 // pred_fallthru
      _
    // Predicated region
    $region82: #{tpu_custom_call.1} parent=1 // pred_check
      _
    $region83: #{tpu_custom_call.1} parent=1 // pred_check_branch
      %161 = sbr.rel (0) target = $region85
    $region84: #{tpu_custom_call.1} parent=1 // pred_region
      %162 = dma.done [#allocation12], 2048
    $region85: #{tpu_custom_call.1} parent=1 // pred_fallthru
      _
    // Predicated region
    $region86: #{tpu_custom_call.1} parent=1 // pred_check
      _
    $region87: #{tpu_custom_call.1} parent=1 // pred_check_branch
      %164 = sbr.rel (0) target = $region89
    $region88: #{tpu_custom_call.1} parent=1 // pred_region
      %165 = dma.done [#allocation12], 8192
    $region89: #{tpu_custom_call.1} parent=1 // pred_fallthru
      _
    // Predicated region
    $region90: #{tpu_custom_call.1} parent=1 // pred_check
      _
    $region91: #{tpu_custom_call.1} parent=1 // pred_check_branch
      %167 = sbr.rel (0) target = $region93
    $region92: #{tpu_custom_call.1} parent=1 // pred_region
      %168 = dma.done [#allocation15], 8192
    $region93: #{tpu_custom_call.1} parent=1 // pred_fallthru
      _
    // Predicated region
    $region94: #{tpu_custom_call.1} parent=1 // pred_check
      _
    $region95: #{tpu_custom_call.1} parent=1 // pred_check_branch
      %170 = sbr.rel (0) target = $region97
    $region96: #{tpu_custom_call.1} parent=1 // pred_region
      %171 = dma.done [#allocation15], 4096
    $region97: #{tpu_custom_call.1} parent=1 // pred_fallthru
      _
    %v173 = vld [vmem:[#allocation2] sm:$0xff]
    %v174 = vld [vmem:[#allocation7] sm:$0xff]
    %v175 = vld [vmem:[#allocation7 + $0x8] sm:$0xff]
    %v176 = vld [vmem:[#allocation7 + $0x10] sm:$0xff]
    %v177 = vld [vmem:[#allocation7 + $0x18] sm:$0xff]
    %v178 = vld [vmem:[#allocation7 + $0x20] sm:$0xff]
    %v179 = vld [vmem:[#allocation7 + $0x28] sm:$0xff]
    %v180 = vld [vmem:[#allocation7 + $0x30] sm:$0xff]
    %v181 = vld [vmem:[#allocation7 + $0x38] sm:$0xff]
    %v182 = vld [vmem:[#allocation7 + $0x40] sm:$0xff]
    %v183 = vld [vmem:[#allocation7 + $0x48] sm:$0xff]
    %v184 = vld [vmem:[#allocation7 + $0x50] sm:$0xff]
    %v185 = vld [vmem:[#allocation7 + $0x58] sm:$0xff]
    %v186 = vld [vmem:[#allocation7 + $0x60] sm:$0xff]
    %v187 = vld [vmem:[#allocation7 + $0x68] sm:$0xff]
    %v188 = vld [vmem:[#allocation7 + $0x70] sm:$0xff]
    %v189 = vld [vmem:[#allocation7 + $0x78] sm:$0xff]
    %v190 = vld [vmem:[#allocation7 + $0x80] sm:$0xff]
    %v191 = vld [vmem:[#allocation7 + $0x88] sm:$0xff]
    %v192 = vld [vmem:[#allocation7 + $0x90] sm:$0xff]
    %v193 = vld [vmem:[#allocation7 + $0x98] sm:$0xff]
    %v194 = vld [vmem:[#allocation7 + $0xa0] sm:$0xff]
    %v195 = vld [vmem:[#allocation7 + $0xa8] sm:$0xff]
    %v196 = vld [vmem:[#allocation7 + $0xb0] sm:$0xff]
    %v197 = vld [vmem:[#allocation7 + $0xb8] sm:$0xff]
    %v198 = vld [vmem:[#allocation7 + $0xc0] sm:$0xff]
    %v199 = vld [vmem:[#allocation7 + $0xc8] sm:$0xff]
    %v200 = vld [vmem:[#allocation7 + $0xd0] sm:$0xff]
    %v201 = vld [vmem:[#allocation7 + $0xd8] sm:$0xff]
    %v202 = vld [vmem:[#allocation7 + $0xe0] sm:$0xff]
    %v203 = vld [vmem:[#allocation7 + $0xe8] sm:$0xff]
    %v204 = vld [vmem:[#allocation7 + $0xf0] sm:$0xff]
    %v205 = vld [vmem:[#allocation7 + $0xf8] sm:$0xff]
    %v206 = vld [vmem:[#allocation7 + $0x100] sm:$0xff]
    %v207 = vld [vmem:[#allocation7 + $0x108] sm:$0xff]
    %v208 = vld [vmem:[#allocation7 + $0x110] sm:$0xff]
    %v209 = vld [vmem:[#allocation7 + $0x118] sm:$0xff]
    %v210 = vld [vmem:[#allocation7 + $0x120] sm:$0xff]
    %v211 = vld [vmem:[#allocation7 + $0x128] sm:$0xff]
    %v212 = vld [vmem:[#allocation7 + $0x130] sm:$0xff]
    %v213 = vld [vmem:[#allocation7 + $0x138] sm:$0xff]
    %v214 = vld [vmem:[#allocation7 + $0x140] sm:$0xff]
    %v215 = vld [vmem:[#allocation7 + $0x148] sm:$0xff]
    %v216 = vld [vmem:[#allocation7 + $0x150] sm:$0xff]
    %v217 = vld [vmem:[#allocation7 + $0x158] sm:$0xff]
    %v218 = vld [vmem:[#allocation7 + $0x160] sm:$0xff]
    %v219 = vld [vmem:[#allocation7 + $0x168] sm:$0xff]
    %v220 = vld [vmem:[#allocation7 + $0x170] sm:$0xff]
    %v221 = vld [vmem:[#allocation7 + $0x178] sm:$0xff]
    %v222 = vld [vmem:[#allocation7 + $0x180] sm:$0xff]
    %v223 = vld [vmem:[#allocation7 + $0x188] sm:$0xff]
    %v224 = vld [vmem:[#allocation7 + $0x190] sm:$0xff]
    %v225 = vld [vmem:[#allocation7 + $0x198] sm:$0xff]
    %v226 = vld [vmem:[#allocation7 + $0x1a0] sm:$0xff]
    %v227 = vld [vmem:[#allocation7 + $0x1a8] sm:$0xff]
    %v228 = vld [vmem:[#allocation7 + $0x1b0] sm:$0xff]
    %v229 = vld [vmem:[#allocation7 + $0x1b8] sm:$0xff]
    %v230 = vld [vmem:[#allocation7 + $0x1c0] sm:$0xff]
    %v231 = vld [vmem:[#allocation7 + $0x1c8] sm:$0xff]
    %v232 = vld [vmem:[#allocation7 + $0x1d0] sm:$0xff]
    %v233 = vld [vmem:[#allocation7 + $0x1d8] sm:$0xff]
    %v234 = vld [vmem:[#allocation7 + $0x1e0] sm:$0xff]
    %v235 = vld [vmem:[#allocation7 + $0x1e8] sm:$0xff]
    %v236 = vld [vmem:[#allocation7 + $0x1f0] sm:$0xff]
    %v237 = vld [vmem:[#allocation7 + $0x1f8] sm:$0xff]
    %v238 = vld [vmem:[%s3] sm:$0xf]
    %v240 = vlaneseq
    %v241 = vshrl.u32 %v240, 7
    %v242 = vsub.s32 0, %v241
    %v243 = vrot.slane %v238, %v242
    %v244 = vlaneseq
    %v245 = vshrl.u32 %v244, 7
    %v246 = vsub.s32 1, %v245
    %v247 = vrot.slane %v238, %v246
    %v248 = vlaneseq
    %v249 = vshrl.u32 %v248, 7
    %v250 = vsub.s32 2, %v249
    %v251 = vrot.slane %v238, %v250
    %v252 = vlaneseq
    %v253 = vshrl.u32 %v252, 7
    %v254 = vsub.s32 3, %v253
    %v255 = vrot.slane %v238, %v254
    %v261 = vunpack.c.l.b16 %v173
    %v262 = vunpack.c.h.b16 %v173
    %v263 = vpack.c.b16 %v261, %v261
    %v264 = vpack.c.b16 %v262, %v262
    %v331 = vunpack.c.l.b16 %v174
    %v332 = vunpack.c.h.b16 %v174
    %v333 = vunpack.c.l.b16 %v175
    %v334 = vunpack.c.h.b16 %v175
    %v335 = vunpack.c.l.b16 %v176
    %v336 = vunpack.c.h.b16 %v176
    %v337 = vunpack.c.l.b16 %v177
    %v338 = vunpack.c.h.b16 %v177
    %v339 = vunpack.c.l.b16 %v178
    %v340 = vunpack.c.h.b16 %v178
    %v341 = vunpack.c.l.b16 %v179
    %v342 = vunpack.c.h.b16 %v179
    %v343 = vunpack.c.l.b16 %v180
    %v344 = vunpack.c.h.b16 %v180
    %v345 = vunpack.c.l.b16 %v181
    %v346 = vunpack.c.h.b16 %v181
    %v347 = vunpack.c.l.b16 %v182
    %v348 = vunpack.c.h.b16 %v182
    %v349 = vunpack.c.l.b16 %v183
    %v350 = vunpack.c.h.b16 %v183
    %v351 = vunpack.c.l.b16 %v184
    %v352 = vunpack.c.h.b16 %v184
    %v353 = vunpack.c.l.b16 %v185
    %v354 = vunpack.c.h.b16 %v185
    %v355 = vunpack.c.l.b16 %v186
    %v356 = vunpack.c.h.b16 %v186
    %v357 = vunpack.c.l.b16 %v187
    %v358 = vunpack.c.h.b16 %v187
    %v359 = vunpack.c.l.b16 %v188
    %v360 = vunpack.c.h.b16 %v188
    %v361 = vunpack.c.l.b16 %v189
    %v362 = vunpack.c.h.b16 %v189
    %v363 = vunpack.c.l.b16 %v190
    %v364 = vunpack.c.h.b16 %v190
    %v365 = vunpack.c.l.b16 %v191
    %v366 = vunpack.c.h.b16 %v191
    %v367 = vunpack.c.l.b16 %v192
    %v368 = vunpack.c.h.b16 %v192
    %v369 = vunpack.c.l.b16 %v193
    %v370 = vunpack.c.h.b16 %v193
    %v371 = vunpack.c.l.b16 %v194
    %v372 = vunpack.c.h.b16 %v194
    %v373 = vunpack.c.l.b16 %v195
    %v374 = vunpack.c.h.b16 %v195
    %v375 = vunpack.c.l.b16 %v196
    %v376 = vunpack.c.h.b16 %v196
    %v377 = vunpack.c.l.b16 %v197
    %v378 = vunpack.c.h.b16 %v197
    %v379 = vunpack.c.l.b16 %v198
    %v380 = vunpack.c.h.b16 %v198
    %v381 = vunpack.c.l.b16 %v199
    %v382 = vunpack.c.h.b16 %v199
    %v383 = vunpack.c.l.b16 %v200
    %v384 = vunpack.c.h.b16 %v200
    %v385 = vunpack.c.l.b16 %v201
    %v386 = vunpack.c.h.b16 %v201
    %v387 = vunpack.c.l.b16 %v202
    %v388 = vunpack.c.h.b16 %v202
    %v389 = vunpack.c.l.b16 %v203
    %v390 = vunpack.c.h.b16 %v203
    %v391 = vunpack.c.l.b16 %v204
    %v392 = vunpack.c.h.b16 %v204
    %v393 = vunpack.c.l.b16 %v205
    %v394 = vunpack.c.h.b16 %v205
    %v395 = vunpack.c.l.b16 %v206
    %v396 = vunpack.c.h.b16 %v206
    %v397 = vunpack.c.l.b16 %v207
    %v398 = vunpack.c.h.b16 %v207
    %v399 = vunpack.c.l.b16 %v208
    %v400 = vunpack.c.h.b16 %v208
    %v401 = vunpack.c.l.b16 %v209
    %v402 = vunpack.c.h.b16 %v209
    %v403 = vunpack.c.l.b16 %v210
    %v404 = vunpack.c.h.b16 %v210
    %v405 = vunpack.c.l.b16 %v211
    %v406 = vunpack.c.h.b16 %v211
    %v407 = vunpack.c.l.b16 %v212
    %v408 = vunpack.c.h.b16 %v212
    %v409 = vunpack.c.l.b16 %v213
    %v410 = vunpack.c.h.b16 %v213
    %v411 = vunpack.c.l.b16 %v214
    %v412 = vunpack.c.h.b16 %v214
    %v413 = vunpack.c.l.b16 %v215
    %v414 = vunpack.c.h.b16 %v215
    %v415 = vunpack.c.l.b16 %v216
    %v416 = vunpack.c.h.b16 %v216
    %v417 = vunpack.c.l.b16 %v217
    %v418 = vunpack.c.h.b16 %v217
    %v419 = vunpack.c.l.b16 %v218
    %v420 = vunpack.c.h.b16 %v218
    %v421 = vunpack.c.l.b16 %v219
    %v422 = vunpack.c.h.b16 %v219
    %v423 = vunpack.c.l.b16 %v220
    %v424 = vunpack.c.h.b16 %v220
    %v425 = vunpack.c.l.b16 %v221
    %v426 = vunpack.c.h.b16 %v221
    %v427 = vunpack.c.l.b16 %v222
    %v428 = vunpack.c.h.b16 %v222
    %v429 = vunpack.c.l.b16 %v223
    %v430 = vunpack.c.h.b16 %v223
    %v431 = vunpack.c.l.b16 %v224
    %v432 = vunpack.c.h.b16 %v224
    %v433 = vunpack.c.l.b16 %v225
    %v434 = vunpack.c.h.b16 %v225
    %v435 = vunpack.c.l.b16 %v226
    %v436 = vunpack.c.h.b16 %v226
    %v437 = vunpack.c.l.b16 %v227
    %v438 = vunpack.c.h.b16 %v227
    %v439 = vunpack.c.l.b16 %v228
    %v440 = vunpack.c.h.b16 %v228
    %v441 = vunpack.c.l.b16 %v229
    %v442 = vunpack.c.h.b16 %v229
    %v443 = vunpack.c.l.b16 %v230
    %v444 = vunpack.c.h.b16 %v230
    %v445 = vunpack.c.l.b16 %v231
    %v446 = vunpack.c.h.b16 %v231
    %v447 = vunpack.c.l.b16 %v232
    %v448 = vunpack.c.h.b16 %v232
    %v449 = vunpack.c.l.b16 %v233
    %v450 = vunpack.c.h.b16 %v233
    %v451 = vunpack.c.l.b16 %v234
    %v452 = vunpack.c.h.b16 %v234
    %v453 = vunpack.c.l.b16 %v235
    %v454 = vunpack.c.h.b16 %v235
    %v455 = vunpack.c.l.b16 %v236
    %v456 = vunpack.c.h.b16 %v236
    %v457 = vunpack.c.l.b16 %v237
    %v458 = vunpack.c.h.b16 %v237
    %v459 = vpack.c.b16 %v335, %v331
    %v460 = vpack.c.b16 %v336, %v332
    %v461 = vpack.c.b16 %v337, %v333
    %v462 = vpack.c.b16 %v338, %v334
    %v463 = vpack.c.b16 %v343, %v339
    %v464 = vpack.c.b16 %v344, %v340
    %v465 = vpack.c.b16 %v345, %v341
    %v466 = vpack.c.b16 %v346, %v342
    %v467 = vpack.c.b16 %v351, %v347
    %v468 = vpack.c.b16 %v352, %v348
    %v469 = vpack.c.b16 %v353, %v349
    %v470 = vpack.c.b16 %v354, %v350
    %v471 = vpack.c.b16 %v359, %v355
    %v472 = vpack.c.b16 %v360, %v356
    %v473 = vpack.c.b16 %v361, %v357
    %v474 = vpack.c.b16 %v362, %v358
    %v475 = vpack.c.b16 %v367, %v363
    %v476 = vpack.c.b16 %v368, %v364
    %v477 = vpack.c.b16 %v369, %v365
    %v478 = vpack.c.b16 %v370, %v366
    %v479 = vpack.c.b16 %v375, %v371
    %v480 = vpack.c.b16 %v376, %v372
    %v481 = vpack.c.b16 %v377, %v373
    %v482 = vpack.c.b16 %v378, %v374
    %v483 = vpack.c.b16 %v383, %v379
    %v484 = vpack.c.b16 %v384, %v380
    %v485 = vpack.c.b16 %v385, %v381
    %v486 = vpack.c.b16 %v386, %v382
    %v487 = vpack.c.b16 %v391, %v387
    %v488 = vpack.c.b16 %v392, %v388
    %v489 = vpack.c.b16 %v393, %v389
    %v490 = vpack.c.b16 %v394, %v390
    %v491 = vpack.c.b16 %v399, %v395
    %v492 = vpack.c.b16 %v400, %v396
    %v493 = vpack.c.b16 %v401, %v397
    %v494 = vpack.c.b16 %v402, %v398
    %v495 = vpack.c.b16 %v407, %v403
    %v496 = vpack.c.b16 %v408, %v404
    %v497 = vpack.c.b16 %v409, %v405
    %v498 = vpack.c.b16 %v410, %v406
    %v499 = vpack.c.b16 %v415, %v411
    %v500 = vpack.c.b16 %v416, %v412
    %v501 = vpack.c.b16 %v417, %v413
    %v502 = vpack.c.b16 %v418, %v414
    %v503 = vpack.c.b16 %v423, %v419
    %v504 = vpack.c.b16 %v424, %v420
    %v505 = vpack.c.b16 %v425, %v421
    %v506 = vpack.c.b16 %v426, %v422
    %v507 = vpack.c.b16 %v431, %v427
    %v508 = vpack.c.b16 %v432, %v428
    %v509 = vpack.c.b16 %v433, %v429
    %v510 = vpack.c.b16 %v434, %v430
    %v511 = vpack.c.b16 %v439, %v435
    %v512 = vpack.c.b16 %v440, %v436
    %v513 = vpack.c.b16 %v441, %v437
    %v514 = vpack.c.b16 %v442, %v438
    %v515 = vpack.c.b16 %v447, %v443
    %v516 = vpack.c.b16 %v448, %v444
    %v517 = vpack.c.b16 %v449, %v445
    %v518 = vpack.c.b16 %v450, %v446
    %v519 = vpack.c.b16 %v455, %v451
    %v520 = vpack.c.b16 %v456, %v452
    %v521 = vpack.c.b16 %v457, %v453
    %v522 = vpack.c.b16 %v458, %v454
    %587 = vmatprep.subr.bf16.mxu0 %v460
    %588 = vmatpush1.bf16.msra.mxu0 %v459
    %589 = vmatprep.subr.bf16.mxu0 %v464
    %590 = vmatpush1.bf16.msra.mxu0 %v463
    %591 = vmatprep.subr.bf16.mxu0 %v468
    %592 = vmatpush1.bf16.msra.mxu0 %v467
    %593 = vmatprep.subr.bf16.mxu0 %v472
    %594 = vmatpush1.bf16.msra.mxu0 %v471
    %595 = vmatprep.subr.bf16.mxu0 %v476
    %596 = vmatpush1.bf16.msra.mxu0 %v475
    %597 = vmatprep.subr.bf16.mxu0 %v480
    %598 = vmatpush1.bf16.msra.mxu0 %v479
    %599 = vmatprep.subr.bf16.mxu0 %v484
    %600 = vmatpush1.bf16.msra.mxu0 %v483
    %601 = vmatprep.subr.bf16.mxu0 %v488
    %602 = vmatpush1.bf16.msra.mxu0 %v487
    %603 = vmatprep.subr.bf16.mxu0 %v492
    %604 = vmatpush1.bf16.msra.mxu0 %v491
    %605 = vmatprep.subr.bf16.mxu0 %v496
    %606 = vmatpush1.bf16.msra.mxu0 %v495
    %607 = vmatprep.subr.bf16.mxu0 %v500
    %608 = vmatpush1.bf16.msra.mxu0 %v499
    %609 = vmatprep.subr.bf16.mxu0 %v504
    %610 = vmatpush1.bf16.msra.mxu0 %v503
    %611 = vmatprep.subr.bf16.mxu0 %v508
    %612 = vmatpush1.bf16.msra.mxu0 %v507
    %613 = vmatprep.subr.bf16.mxu0 %v512
    %614 = vmatpush1.bf16.msra.mxu0 %v511
    %615 = vmatprep.subr.bf16.mxu0 %v516
    %616 = vmatpush1.bf16.msra.mxu0 %v515
    %617 = vmatprep.subr.bf16.mxu0 %v520
    %618 = vmatpush1.bf16.msra.mxu0 %v519
    %619 = vmatprep.mubr.bf16.mxu0 %v264
    %620 = vmatmul.mubr.bf16.gmra.mrb[0].mxu0 %v263
    %v621 = vpop.f32.mrb[0].mxu0
    %v622 = vadd.f32 %v243, %v621
    %v623 = vpop.f32.mrb[0].mxu0
    %v624 = vadd.f32 %v247, %v623
    %v625 = vpop.f32.mrb[0].mxu0
    %v626 = vpop.f32.mrb[0].mxu0
    %627 = vdwg.mxu0
    %628 = vmatprep.subr.bf16.mxu0 %v462
    %629 = vmatpush1.bf16.msra.mxu0 %v461
    %630 = vmatprep.subr.bf16.mxu0 %v466
    %631 = vmatpush1.bf16.msra.mxu0 %v465
    %632 = vmatprep.subr.bf16.mxu0 %v470
    %633 = vmatpush1.bf16.msra.mxu0 %v469
    %634 = vmatprep.subr.bf16.mxu0 %v474
    %635 = vmatpush1.bf16.msra.mxu0 %v473
    %636 = vmatprep.subr.bf16.mxu0 %v478
    %637 = vmatpush1.bf16.msra.mxu0 %v477
    %638 = vmatprep.subr.bf16.mxu0 %v482
    %639 = vmatpush1.bf16.msra.mxu0 %v481
    %640 = vmatprep.subr.bf16.mxu0 %v486
    %641 = vmatpush1.bf16.msra.mxu0 %v485
    %642 = vmatprep.subr.bf16.mxu0 %v490
    %643 = vmatpush1.bf16.msra.mxu0 %v489
    %644 = vmatprep.subr.bf16.mxu0 %v494
    %645 = vmatpush1.bf16.msra.mxu0 %v493
    %646 = vmatprep.subr.bf16.mxu0 %v498
    %647 = vmatpush1.bf16.msra.mxu0 %v497
    %648 = vmatprep.subr.bf16.mxu0 %v502
    %649 = vmatpush1.bf16.msra.mxu0 %v501
    %650 = vmatprep.subr.bf16.mxu0 %v506
    %651 = vmatpush1.bf16.msra.mxu0 %v505
    %652 = vmatprep.subr.bf16.mxu0 %v510
    %653 = vmatpush1.bf16.msra.mxu0 %v509
    %654 = vmatprep.subr.bf16.mxu0 %v514
    %655 = vmatpush1.bf16.msra.mxu0 %v513
    %656 = vmatprep.subr.bf16.mxu0 %v518
    %657 = vmatpush1.bf16.msra.mxu0 %v517
    %658 = vmatprep.subr.bf16.mxu0 %v522
    %659 = vmatpush1.bf16.msra.mxu0 %v521
    %660 = vmatprep.mubr.bf16.mxu0 %v264
    %661 = vmatmul.mubr.bf16.gmra.mrb[0].mxu0 %v263
    %v662 = vpop.f32.mrb[0].mxu0
    %v663 = vadd.f32 %v251, %v662
    %v664 = vpop.f32.mrb[0].mxu0
    %v665 = vadd.f32 %v255, %v664
    %v666 = vpop.f32.mrb[0].mxu0
    %v667 = vpop.f32.mrb[0].mxu0
    %668 = vdwg.mxu0
    %vm669 = vcmp.gt.f32.partialorder %v622, 0.0
    %vm670 = vcmp.gt.f32.partialorder %v624, 0.0
    %vm671 = vcmp.gt.f32.partialorder %v663, 0.0
    %vm672 = vcmp.gt.f32.partialorder %v665, 0.0
    %v673 = vmin.f32 %v622, 0.0
    %v674 = vmin.f32 %v624, 0.0
    %v675 = vmin.f32 %v663, 0.0
    %v676 = vmin.f32 %v665, 0.0
    %v677 = vmul.f32 %v673, 1.442695
    %v678 = vpow.pop %v677
    %v679 = vmul.f32 %v674, 1.442695
    %v680 = vpow.pop %v679
    %v681 = vmul.f32 %v675, 1.442695
    %v682 = vpow.pop %v681
    %v683 = vmul.f32 %v676, 1.442695
    %v684 = vpow.pop %v683
    %v685 = vsub.f32 %v678, 1.0
    %v686 = vsub.f32 %v680, 1.0
    %v687 = vsub.f32 %v682, 1.0
    %v688 = vsub.f32 %v684, 1.0
    %v689 = vsel %vm669, %v622, %v685
    %v690 = vsel %vm670, %v624, %v686
    %v691 = vsel %vm671, %v663, %v687
    %v692 = vsel %vm672, %v665, %v688
    %v693 = vpack.c.bf16 %v689, %v689
    %v694 = vpack.c.bf16 %v690, %v690
    %v695 = vpack.c.bf16 %v691, %v691
    %v696 = vpack.c.bf16 %v692, %v692
    %v697 = vld [vmem:[#allocation8] sm:$0xff]
    %v698 = vld [vmem:[#allocation8 + $0x8] sm:$0xff]
    %v699 = vld [vmem:[#allocation8 + $0x10] sm:$0xff]
    %v700 = vld [vmem:[#allocation8 + $0x18] sm:$0xff]
    %v701 = vld [vmem:[#allocation8 + $0x20] sm:$0xff]
    %v702 = vld [vmem:[#allocation8 + $0x28] sm:$0xff]
    %v703 = vld [vmem:[#allocation8 + $0x30] sm:$0xff]
    %v704 = vld [vmem:[#allocation8 + $0x38] sm:$0xff]
    %v705 = vld [vmem:[#allocation8 + $0x40] sm:$0xff]
    %v706 = vld [vmem:[#allocation8 + $0x48] sm:$0xff]
    %v707 = vld [vmem:[#allocation8 + $0x50] sm:$0xff]
    %v708 = vld [vmem:[#allocation8 + $0x58] sm:$0xff]
    %v709 = vld [vmem:[#allocation8 + $0x60] sm:$0xff]
    %v710 = vld [vmem:[#allocation8 + $0x68] sm:$0xff]
    %v711 = vld [vmem:[#allocation8 + $0x70] sm:$0xff]
    %v712 = vld [vmem:[#allocation8 + $0x78] sm:$0xff]
    %v713 = vld [vmem:[#allocation8 + $0x80] sm:$0xff]
    %v714 = vld [vmem:[#allocation8 + $0x88] sm:$0xff]
    %v715 = vld [vmem:[#allocation8 + $0x90] sm:$0xff]
    %v716 = vld [vmem:[#allocation8 + $0x98] sm:$0xff]
    %v717 = vld [vmem:[#allocation8 + $0xa0] sm:$0xff]
    %v718 = vld [vmem:[#allocation8 + $0xa8] sm:$0xff]
    %v719 = vld [vmem:[#allocation8 + $0xb0] sm:$0xff]
    %v720 = vld [vmem:[#allocation8 + $0xb8] sm:$0xff]
    %v721 = vld [vmem:[#allocation8 + $0xc0] sm:$0xff]
    %v722 = vld [vmem:[#allocation8 + $0xc8] sm:$0xff]
    %v723 = vld [vmem:[#allocation8 + $0xd0] sm:$0xff]
    %v724 = vld [vmem:[#allocation8 + $0xd8] sm:$0xff]
    %v725 = vld [vmem:[#allocation8 + $0xe0] sm:$0xff]
    %v726 = vld [vmem:[#allocation8 + $0xe8] sm:$0xff]
    %v727 = vld [vmem:[#allocation8 + $0xf0] sm:$0xff]
    %v728 = vld [vmem:[#allocation8 + $0xf8] sm:$0xff]
    %v729 = vld [vmem:[#allocation8 + $0x100] sm:$0xff]
    %v730 = vld [vmem:[#allocation8 + $0x108] sm:$0xff]
    %v731 = vld [vmem:[#allocation8 + $0x110] sm:$0xff]
    %v732 = vld [vmem:[#allocation8 + $0x118] sm:$0xff]
    %v733 = vld [vmem:[#allocation8 + $0x120] sm:$0xff]
    %v734 = vld [vmem:[#allocation8 + $0x128] sm:$0xff]
    %v735 = vld [vmem:[#allocation8 + $0x130] sm:$0xff]
    %v736 = vld [vmem:[#allocation8 + $0x138] sm:$0xff]
    %v737 = vld [vmem:[#allocation8 + $0x140] sm:$0xff]
    %v738 = vld [vmem:[#allocation8 + $0x148] sm:$0xff]
    %v739 = vld [vmem:[#allocation8 + $0x150] sm:$0xff]
    %v740 = vld [vmem:[#allocation8 + $0x158] sm:$0xff]
    %v741 = vld [vmem:[#allocation8 + $0x160] sm:$0xff]
    %v742 = vld [vmem:[#allocation8 + $0x168] sm:$0xff]
    %v743 = vld [vmem:[#allocation8 + $0x170] sm:$0xff]
    %v744 = vld [vmem:[#allocation8 + $0x178] sm:$0xff]
    %v745 = vld [vmem:[#allocation8 + $0x180] sm:$0xff]
    %v746 = vld [vmem:[#allocation8 + $0x188] sm:$0xff]
    %v747 = vld [vmem:[#allocation8 + $0x190] sm:$0xff]
    %v748 = vld [vmem:[#allocation8 + $0x198] sm:$0xff]
    %v749 = vld [vmem:[#allocation8 + $0x1a0] sm:$0xff]
    %v750 = vld [vmem:[#allocation8 + $0x1a8] sm:$0xff]
    %v751 = vld [vmem:[#allocation8 + $0x1b0] sm:$0xff]
    %v752 = vld [vmem:[#allocation8 + $0x1b8] sm:$0xff]
    %v753 = vld [vmem:[#allocation8 + $0x1c0] sm:$0xff]
    %v754 = vld [vmem:[#allocation8 + $0x1c8] sm:$0xff]
    %v755 = vld [vmem:[#allocation8 + $0x1d0] sm:$0xff]
    %v756 = vld [vmem:[#allocation8 + $0x1d8] sm:$0xff]
    %v757 = vld [vmem:[#allocation8 + $0x1e0] sm:$0xff]
    %v758 = vld [vmem:[#allocation8 + $0x1e8] sm:$0xff]
    %v759 = vld [vmem:[#allocation8 + $0x1f0] sm:$0xff]
    %v760 = vld [vmem:[#allocation8 + $0x1f8] sm:$0xff]
    %v761 = vld [vmem:[%s5] sm:$0x3]
    %v763 = vlaneseq
    %v764 = vshrl.u32 %v763, 7
    %v765 = vsub.s32 0, %v764
    %v766 = vrot.slane %v761, %v765
    %v767 = vlaneseq
    %v768 = vshrl.u32 %v767, 7
    %v769 = vsub.s32 1, %v768
    %v770 = vrot.slane %v761, %v769
    %v837 = vunpack.c.l.b16 %v697
    %v838 = vunpack.c.h.b16 %v697
    %v839 = vunpack.c.l.b16 %v698
    %v840 = vunpack.c.h.b16 %v698
    %v841 = vunpack.c.l.b16 %v699
    %v842 = vunpack.c.h.b16 %v699
    %v843 = vunpack.c.l.b16 %v700
    %v844 = vunpack.c.h.b16 %v700
    %v845 = vunpack.c.l.b16 %v701
    %v846 = vunpack.c.h.b16 %v701
    %v847 = vunpack.c.l.b16 %v702
    %v848 = vunpack.c.h.b16 %v702
    %v849 = vunpack.c.l.b16 %v703
    %v850 = vunpack.c.h.b16 %v703
    %v851 = vunpack.c.l.b16 %v704
    %v852 = vunpack.c.h.b16 %v704
    %v853 = vunpack.c.l.b16 %v705
    %v854 = vunpack.c.h.b16 %v705
    %v855 = vunpack.c.l.b16 %v706
    %v856 = vunpack.c.h.b16 %v706
    %v857 = vunpack.c.l.b16 %v707
    %v858 = vunpack.c.h.b16 %v707
    %v859 = vunpack.c.l.b16 %v708
    %v860 = vunpack.c.h.b16 %v708
    %v861 = vunpack.c.l.b16 %v709
    %v862 = vunpack.c.h.b16 %v709
    %v863 = vunpack.c.l.b16 %v710
    %v864 = vunpack.c.h.b16 %v710
    %v865 = vunpack.c.l.b16 %v711
    %v866 = vunpack.c.h.b16 %v711
    %v867 = vunpack.c.l.b16 %v712
    %v868 = vunpack.c.h.b16 %v712
    %v869 = vunpack.c.l.b16 %v713
    %v870 = vunpack.c.h.b16 %v713
    %v871 = vunpack.c.l.b16 %v714
    %v872 = vunpack.c.h.b16 %v714
    %v873 = vunpack.c.l.b16 %v715
    %v874 = vunpack.c.h.b16 %v715
    %v875 = vunpack.c.l.b16 %v716
    %v876 = vunpack.c.h.b16 %v716
    %v877 = vunpack.c.l.b16 %v717
    %v878 = vunpack.c.h.b16 %v717
    %v879 = vunpack.c.l.b16 %v718
    %v880 = vunpack.c.h.b16 %v718
    %v881 = vunpack.c.l.b16 %v719
    %v882 = vunpack.c.h.b16 %v719
    %v883 = vunpack.c.l.b16 %v720
    %v884 = vunpack.c.h.b16 %v720
    %v885 = vunpack.c.l.b16 %v721
    %v886 = vunpack.c.h.b16 %v721
    %v887 = vunpack.c.l.b16 %v722
    %v888 = vunpack.c.h.b16 %v722
    %v889 = vunpack.c.l.b16 %v723
    %v890 = vunpack.c.h.b16 %v723
    %v891 = vunpack.c.l.b16 %v724
    %v892 = vunpack.c.h.b16 %v724
    %v893 = vunpack.c.l.b16 %v725
    %v894 = vunpack.c.h.b16 %v725
    %v895 = vunpack.c.l.b16 %v726
    %v896 = vunpack.c.h.b16 %v726
    %v897 = vunpack.c.l.b16 %v727
    %v898 = vunpack.c.h.b16 %v727
    %v899 = vunpack.c.l.b16 %v728
    %v900 = vunpack.c.h.b16 %v728
    %v901 = vunpack.c.l.b16 %v729
    %v902 = vunpack.c.h.b16 %v729
    %v903 = vunpack.c.l.b16 %v730
    %v904 = vunpack.c.h.b16 %v730
    %v905 = vunpack.c.l.b16 %v731
    %v906 = vunpack.c.h.b16 %v731
    %v907 = vunpack.c.l.b16 %v732
    %v908 = vunpack.c.h.b16 %v732
    %v909 = vunpack.c.l.b16 %v733
    %v910 = vunpack.c.h.b16 %v733
    %v911 = vunpack.c.l.b16 %v734
    %v912 = vunpack.c.h.b16 %v734
    %v913 = vunpack.c.l.b16 %v735
    %v914 = vunpack.c.h.b16 %v735
    %v915 = vunpack.c.l.b16 %v736
    %v916 = vunpack.c.h.b16 %v736
    %v917 = vunpack.c.l.b16 %v737
    %v918 = vunpack.c.h.b16 %v737
    %v919 = vunpack.c.l.b16 %v738
    %v920 = vunpack.c.h.b16 %v738
    %v921 = vunpack.c.l.b16 %v739
    %v922 = vunpack.c.h.b16 %v739
    %v923 = vunpack.c.l.b16 %v740
    %v924 = vunpack.c.h.b16 %v740
    %v925 = vunpack.c.l.b16 %v741
    %v926 = vunpack.c.h.b16 %v741
    %v927 = vunpack.c.l.b16 %v742
    %v928 = vunpack.c.h.b16 %v742
    %v929 = vunpack.c.l.b16 %v743
    %v930 = vunpack.c.h.b16 %v743
    %v931 = vunpack.c.l.b16 %v744
    %v932 = vunpack.c.h.b16 %v744
    %v933 = vunpack.c.l.b16 %v745
    %v934 = vunpack.c.h.b16 %v745
    %v935 = vunpack.c.l.b16 %v746
    %v936 = vunpack.c.h.b16 %v746
    %v937 = vunpack.c.l.b16 %v747
    %v938 = vunpack.c.h.b16 %v747
    %v939 = vunpack.c.l.b16 %v748
    %v940 = vunpack.c.h.b16 %v748
    %v941 = vunpack.c.l.b16 %v749
    %v942 = vunpack.c.h.b16 %v749
    %v943 = vunpack.c.l.b16 %v750
    %v944 = vunpack.c.h.b16 %v750
    %v945 = vunpack.c.l.b16 %v751
    %v946 = vunpack.c.h.b16 %v751
    %v947 = vunpack.c.l.b16 %v752
    %v948 = vunpack.c.h.b16 %v752
    %v949 = vunpack.c.l.b16 %v753
    %v950 = vunpack.c.h.b16 %v753
    %v951 = vunpack.c.l.b16 %v754
    %v952 = vunpack.c.h.b16 %v754
    %v953 = vunpack.c.l.b16 %v755
    %v954 = vunpack.c.h.b16 %v755
    %v955 = vunpack.c.l.b16 %v756
    %v956 = vunpack.c.h.b16 %v756
    %v957 = vunpack.c.l.b16 %v757
    %v958 = vunpack.c.h.b16 %v757
    %v959 = vunpack.c.l.b16 %v758
    %v960 = vunpack.c.h.b16 %v758
    %v961 = vunpack.c.l.b16 %v759
    %v962 = vunpack.c.h.b16 %v759
    %v963 = vunpack.c.l.b16 %v760
    %v964 = vunpack.c.h.b16 %v760
    %v965 = vpack.c.b16 %v839, %v837
    %v966 = vpack.c.b16 %v840, %v838
    %v967 = vpack.c.b16 %v843, %v841
    %v968 = vpack.c.b16 %v844, %v842
    %v969 = vpack.c.b16 %v847, %v845
    %v970 = vpack.c.b16 %v848, %v846
    %v971 = vpack.c.b16 %v851, %v849
    %v972 = vpack.c.b16 %v852, %v850
    %v973 = vpack.c.b16 %v855, %v853
    %v974 = vpack.c.b16 %v856, %v854
    %v975 = vpack.c.b16 %v859, %v857
    %v976 = vpack.c.b16 %v860, %v858
    %v977 = vpack.c.b16 %v863, %v861
    %v978 = vpack.c.b16 %v864, %v862
    %v979 = vpack.c.b16 %v867, %v865
    %v980 = vpack.c.b16 %v868, %v866
    %v981 = vpack.c.b16 %v871, %v869
    %v982 = vpack.c.b16 %v872, %v870
    %v983 = vpack.c.b16 %v875, %v873
    %v984 = vpack.c.b16 %v876, %v874
    %v985 = vpack.c.b16 %v879, %v877
    %v986 = vpack.c.b16 %v880, %v878
    %v987 = vpack.c.b16 %v883, %v881
    %v988 = vpack.c.b16 %v884, %v882
    %v989 = vpack.c.b16 %v887, %v885
    %v990 = vpack.c.b16 %v888, %v886
    %v991 = vpack.c.b16 %v891, %v889
    %v992 = vpack.c.b16 %v892, %v890
    %v993 = vpack.c.b16 %v895, %v893
    %v994 = vpack.c.b16 %v896, %v894
    %v995 = vpack.c.b16 %v899, %v897
    %v996 = vpack.c.b16 %v900, %v898
    %v997 = vpack.c.b16 %v903, %v901
    %v998 = vpack.c.b16 %v904, %v902
    %v999 = vpack.c.b16 %v907, %v905
    %v1000 = vpack.c.b16 %v908, %v906
    %v1001 = vpack.c.b16 %v911, %v909
    %v1002 = vpack.c.b16 %v912, %v910
    %v1003 = vpack.c.b16 %v915, %v913
    %v1004 = vpack.c.b16 %v916, %v914
    %v1005 = vpack.c.b16 %v919, %v917
    %v1006 = vpack.c.b16 %v920, %v918
    %v1007 = vpack.c.b16 %v923, %v921
    %v1008 = vpack.c.b16 %v924, %v922
    %v1009 = vpack.c.b16 %v927, %v925
    %v1010 = vpack.c.b16 %v928, %v926
    %v1011 = vpack.c.b16 %v931, %v929
    %v1012 = vpack.c.b16 %v932, %v930
    %v1013 = vpack.c.b16 %v935, %v933
    %v1014 = vpack.c.b16 %v936, %v934
    %v1015 = vpack.c.b16 %v939, %v937
    %v1016 = vpack.c.b16 %v940, %v938
    %v1017 = vpack.c.b16 %v943, %v941
    %v1018 = vpack.c.b16 %v944, %v942
    %v1019 = vpack.c.b16 %v947, %v945
    %v1020 = vpack.c.b16 %v948, %v946
    %v1021 = vpack.c.b16 %v951, %v949
    %v1022 = vpack.c.b16 %v952, %v950
    %v1023 = vpack.c.b16 %v955, %v953
    %v1024 = vpack.c.b16 %v956, %v954
    %v1025 = vpack.c.b16 %v959, %v957
    %v1026 = vpack.c.b16 %v960, %v958
    %v1027 = vpack.c.b16 %v963, %v961
    %v1028 = vpack.c.b16 %v964, %v962
    %1093 = vmatprep.subr.bf16.mxu0 %v966
    %1094 = vmatpush1.bf16.msra.mxu0 %v965
    %1095 = vmatprep.subr.bf16.mxu0 %v968
    %1096 = vmatpush1.bf16.msra.mxu0 %v967
    %1097 = vmatprep.subr.bf16.mxu0 %v970
    %1098 = vmatpush1.bf16.msra.mxu0 %v969
    %1099 = vmatprep.subr.bf16.mxu0 %v972
    %1100 = vmatpush1.bf16.msra.mxu0 %v971
    %1101 = vmatprep.subr.bf16.mxu0 %v974
    %1102 = vmatpush1.bf16.msra.mxu0 %v973
    %1103 = vmatprep.subr.bf16.mxu0 %v976
    %1104 = vmatpush1.bf16.msra.mxu0 %v975
    %1105 = vmatprep.subr.bf16.mxu0 %v978
    %1106 = vmatpush1.bf16.msra.mxu0 %v977
    %1107 = vmatprep.subr.bf16.mxu0 %v980
    %1108 = vmatpush1.bf16.msra.mxu0 %v979
    %1109 = vmatprep.subr.bf16.mxu0 %v982
    %1110 = vmatpush1.bf16.msra.mxu0 %v981
    %1111 = vmatprep.subr.bf16.mxu0 %v984
    %1112 = vmatpush1.bf16.msra.mxu0 %v983
    %1113 = vmatprep.subr.bf16.mxu0 %v986
    %1114 = vmatpush1.bf16.msra.mxu0 %v985
    %1115 = vmatprep.subr.bf16.mxu0 %v988
    %1116 = vmatpush1.bf16.msra.mxu0 %v987
    %1117 = vmatprep.subr.bf16.mxu0 %v990
    %1118 = vmatpush1.bf16.msra.mxu0 %v989
    %1119 = vmatprep.subr.bf16.mxu0 %v992
    %1120 = vmatpush1.bf16.msra.mxu0 %v991
    %1121 = vmatprep.subr.bf16.mxu0 %v994
    %1122 = vmatpush1.bf16.msra.mxu0 %v993
    %1123 = vmatprep.subr.bf16.mxu0 %v996
    %1124 = vmatpush1.bf16.msra.mxu0 %v995
    %1125 = vmatprep.mubr.bf16.mxu0 %v694
    %1126 = vmatmul.mubr.bf16.gmra.mrb[0].mxu0 %v693
    %v1127 = vpop.f32.mrb[0].mxu0
    %v1128 = vadd.f32 %v766, %v1127
    %v1129 = vpop.f32.mrb[0].mxu0
    %v1130 = vadd.f32 %v770, %v1129
    %v1131 = vpop.f32.mrb[0].mxu0
    %v1132 = vpop.f32.mrb[0].mxu0
    %1133 = vdwg.mxu0
    %1134 = vmatprep.subr.bf16.mxu0 %v998
    %1135 = vmatpush1.bf16.msra.mxu0 %v997
    %1136 = vmatprep.subr.bf16.mxu0 %v1000
    %1137 = vmatpush1.bf16.msra.mxu0 %v999
    %1138 = vmatprep.subr.bf16.mxu0 %v1002
    %1139 = vmatpush1.bf16.msra.mxu0 %v1001
    %1140 = vmatprep.subr.bf16.mxu0 %v1004
    %1141 = vmatpush1.bf16.msra.mxu0 %v1003
    %1142 = vmatprep.subr.bf16.mxu0 %v1006
    %1143 = vmatpush1.bf16.msra.mxu0 %v1005
    %1144 = vmatprep.subr.bf16.mxu0 %v1008
    %1145 = vmatpush1.bf16.msra.mxu0 %v1007
    %1146 = vmatprep.subr.bf16.mxu0 %v1010
    %1147 = vmatpush1.bf16.msra.mxu0 %v1009
    %1148 = vmatprep.subr.bf16.mxu0 %v1012
    %1149 = vmatpush1.bf16.msra.mxu0 %v1011
    %1150 = vmatprep.subr.bf16.mxu0 %v1014
    %1151 = vmatpush1.bf16.msra.mxu0 %v1013
    %1152 = vmatprep.subr.bf16.mxu0 %v1016
    %1153 = vmatpush1.bf16.msra.mxu0 %v1015
    %1154 = vmatprep.subr.bf16.mxu0 %v1018
    %1155 = vmatpush1.bf16.msra.mxu0 %v1017
    %1156 = vmatprep.subr.bf16.mxu0 %v1020
    %1157 = vmatpush1.bf16.msra.mxu0 %v1019
    %1158 = vmatprep.subr.bf16.mxu0 %v1022
    %1159 = vmatpush1.bf16.msra.mxu0 %v1021
    %1160 = vmatprep.subr.bf16.mxu0 %v1024
    %1161 = vmatpush1.bf16.msra.mxu0 %v1023
    %1162 = vmatprep.subr.bf16.mxu0 %v1026
    %1163 = vmatpush1.bf16.msra.mxu0 %v1025
    %1164 = vmatprep.subr.bf16.mxu0 %v1028
    %1165 = vmatpush1.bf16.msra.mxu0 %v1027
    %1166 = vmatprep.mubr.bf16.mxu0 %v696
    %1167 = vmatmul.mubr.bf16.gmra.mrb[0].mxu0 %v695
    %v1168 = vpop.f32.mrb[0].mxu0
    %v1169 = vadd.f32 %v1128, %v1168
    %v1170 = vpop.f32.mrb[0].mxu0
    %v1171 = vadd.f32 %v1130, %v1170
    %v1172 = vpop.f32.mrb[0].mxu0
    %v1173 = vpop.f32.mrb[0].mxu0
    %1174 = vdwg.mxu0
    %vm1175 = vcmp.gt.f32.partialorder %v1169, 0.0
    %vm1176 = vcmp.gt.f32.partialorder %v1171, 0.0
    %v1177 = vmin.f32 %v1169, 0.0
    %v1178 = vmin.f32 %v1171, 0.0
    %v1179 = vmul.f32 %v1177, 1.442695
    %v1180 = vpow.pop %v1179
    %v1181 = vmul.f32 %v1178, 1.442695
    %v1182 = vpow.pop %v1181
    %v1183 = vsub.f32 %v1180, 1.0
    %v1184 = vsub.f32 %v1182, 1.0
    %v1185 = vsel %vm1175, %v1169, %v1183
    %v1186 = vsel %vm1176, %v1171, %v1184
    %v1187 = vpack.c.bf16 %v1185, %v1185
    %v1188 = vpack.c.bf16 %v1186, %v1186
    %v1189 = vld [vmem:[#allocation10] sm:$0xf]
    %v1190 = vld [vmem:[#allocation10 + $0x4] sm:$0xf]
    %v1191 = vld [vmem:[#allocation10 + $0x8] sm:$0xf]
    %v1192 = vld [vmem:[#allocation10 + $0xc] sm:$0xf]
    %v1193 = vld [vmem:[#allocation10 + $0x10] sm:$0xf]
    %v1194 = vld [vmem:[#allocation10 + $0x14] sm:$0xf]
    %v1195 = vld [vmem:[#allocation10 + $0x18] sm:$0xf]
    %v1196 = vld [vmem:[#allocation10 + $0x1c] sm:$0xf]
    %v1197 = vld [vmem:[#allocation10 + $0x20] sm:$0xf]
    %v1198 = vld [vmem:[#allocation10 + $0x24] sm:$0xf]
    %v1199 = vld [vmem:[#allocation10 + $0x28] sm:$0xf]
    %v1200 = vld [vmem:[#allocation10 + $0x2c] sm:$0xf]
    %v1201 = vld [vmem:[#allocation10 + $0x30] sm:$0xf]
    %v1202 = vld [vmem:[#allocation10 + $0x34] sm:$0xf]
    %v1203 = vld [vmem:[#allocation10 + $0x38] sm:$0xf]
    %v1204 = vld [vmem:[#allocation10 + $0x3c] sm:$0xf]
    %v1205 = vld [vmem:[#allocation10 + $0x40] sm:$0xf]
    %v1206 = vld [vmem:[#allocation10 + $0x44] sm:$0xf]
    %v1207 = vld [vmem:[#allocation10 + $0x48] sm:$0xf]
    %v1208 = vld [vmem:[#allocation10 + $0x4c] sm:$0xf]
    %v1209 = vld [vmem:[#allocation10 + $0x50] sm:$0xf]
    %v1210 = vld [vmem:[#allocation10 + $0x54] sm:$0xf]
    %v1211 = vld [vmem:[#allocation10 + $0x58] sm:$0xf]
    %v1212 = vld [vmem:[#allocation10 + $0x5c] sm:$0xf]
    %v1213 = vld [vmem:[#allocation10 + $0x60] sm:$0xf]
    %v1214 = vld [vmem:[#allocation10 + $0x64] sm:$0xf]
    %v1215 = vld [vmem:[#allocation10 + $0x68] sm:$0xf]
    %v1216 = vld [vmem:[#allocation10 + $0x6c] sm:$0xf]
    %v1217 = vld [vmem:[#allocation10 + $0x70] sm:$0xf]
    %v1218 = vld [vmem:[#allocation10 + $0x74] sm:$0xf]
    %v1219 = vld [vmem:[#allocation10 + $0x78] sm:$0xf]
    %v1220 = vld [vmem:[#allocation10 + $0x7c] sm:$0xf]
    %v1221 = vld [vmem:[%s7] sm:$0x1]
    %v1223 = vlaneseq
    %v1224 = vshrl.u32 %v1223, 7
    %v1225 = vsub.s32 0, %v1224
    %v1226 = vrot.slane %v1221, %v1225
    %v1260 = vunpack.c.l.b16 %v1189
    %v1261 = vunpack.c.l.b16 %v1190
    %v1262 = vunpack.c.l.b16 %v1191
    %v1263 = vunpack.c.l.b16 %v1192
    %v1264 = vunpack.c.l.b16 %v1193
    %v1265 = vunpack.c.l.b16 %v1194
    %v1266 = vunpack.c.l.b16 %v1195
    %v1267 = vunpack.c.l.b16 %v1196
    %v1268 = vunpack.c.l.b16 %v1197
    %v1269 = vunpack.c.l.b16 %v1198
    %v1270 = vunpack.c.l.b16 %v1199
    %v1271 = vunpack.c.l.b16 %v1200
    %v1272 = vunpack.c.l.b16 %v1201
    %v1273 = vunpack.c.l.b16 %v1202
    %v1274 = vunpack.c.l.b16 %v1203
    %v1275 = vunpack.c.l.b16 %v1204
    %v1276 = vunpack.c.l.b16 %v1205
    %v1277 = vunpack.c.l.b16 %v1206
    %v1278 = vunpack.c.l.b16 %v1207
    %v1279 = vunpack.c.l.b16 %v1208
    %v1280 = vunpack.c.l.b16 %v1209
    %v1281 = vunpack.c.l.b16 %v1210
    %v1282 = vunpack.c.l.b16 %v1211
    %v1283 = vunpack.c.l.b16 %v1212
    %v1284 = vunpack.c.l.b16 %v1213
    %v1285 = vunpack.c.l.b16 %v1214
    %v1286 = vunpack.c.l.b16 %v1215
    %v1287 = vunpack.c.l.b16 %v1216
    %v1288 = vunpack.c.l.b16 %v1217
    %v1289 = vunpack.c.l.b16 %v1218
    %v1290 = vunpack.c.l.b16 %v1219
    %v1291 = vunpack.c.l.b16 %v1220
    %v1292 = vpack.c.b16 %v1261, %v1260
    %v1293 = vpack.c.b16 %v1263, %v1262
    %v1294 = vpack.c.b16 %v1265, %v1264
    %v1295 = vpack.c.b16 %v1267, %v1266
    %v1296 = vpack.c.b16 %v1269, %v1268
    %v1297 = vpack.c.b16 %v1271, %v1270
    %v1298 = vpack.c.b16 %v1273, %v1272
    %v1299 = vpack.c.b16 %v1275, %v1274
    %v1300 = vpack.c.b16 %v1277, %v1276
    %v1301 = vpack.c.b16 %v1279, %v1278
    %v1302 = vpack.c.b16 %v1281, %v1280
    %v1303 = vpack.c.b16 %v1283, %v1282
    %v1304 = vpack.c.b16 %v1285, %v1284
    %v1305 = vpack.c.b16 %v1287, %v1286
    %v1306 = vpack.c.b16 %v1289, %v1288
    %v1307 = vpack.c.b16 %v1291, %v1290
    %1324 = vmatprep.subr.bf16.mxu0 0
    %1325 = vmatpush1.bf16.msra.mxu0 %v1292
    %1326 = vmatprep.subr.bf16.mxu0 0
    %1327 = vmatpush1.bf16.msra.mxu0 %v1293
    %1328 = vmatprep.subr.bf16.mxu0 0
    %1329 = vmatpush1.bf16.msra.mxu0 %v1294
    %1330 = vmatprep.subr.bf16.mxu0 0
    %1331 = vmatpush1.bf16.msra.mxu0 %v1295
    %1332 = vmatprep.subr.bf16.mxu0 0
    %1333 = vmatpush1.bf16.msra.mxu0 %v1296
    %1334 = vmatprep.subr.bf16.mxu0 0
    %1335 = vmatpush1.bf16.msra.mxu0 %v1297
    %1336 = vmatprep.subr.bf16.mxu0 0
    %1337 = vmatpush1.bf16.msra.mxu0 %v1298
    %1338 = vmatprep.subr.bf16.mxu0 0
    %1339 = vmatpush1.bf16.msra.mxu0 %v1299
    %1340 = vmatprep.subr.bf16.mxu0 0
    %1341 = vmatpush1.bf16.msra.mxu0 %v1300
    %1342 = vmatprep.subr.bf16.mxu0 0
    %1343 = vmatpush1.bf16.msra.mxu0 %v1301
    %1344 = vmatprep.subr.bf16.mxu0 0
    %1345 = vmatpush1.bf16.msra.mxu0 %v1302
    %1346 = vmatprep.subr.bf16.mxu0 0
    %1347 = vmatpush1.bf16.msra.mxu0 %v1303
    %1348 = vmatprep.subr.bf16.mxu0 0
    %1349 = vmatpush1.bf16.msra.mxu0 %v1304
    %1350 = vmatprep.subr.bf16.mxu0 0
    %1351 = vmatpush1.bf16.msra.mxu0 %v1305
    %1352 = vmatprep.subr.bf16.mxu0 0
    %1353 = vmatpush1.bf16.msra.mxu0 %v1306
    %1354 = vmatprep.subr.bf16.mxu0 0
    %1355 = vmatpush1.bf16.msra.mxu0 %v1307
    %1356 = vmatprep.mubr.bf16.mxu0 %v1188
    %1357 = vmatmul.mubr.bf16.gmra.mrb[0].mxu0 %v1187
    %v1358 = vpop.f32.mrb[0].mxu0
    %v1359 = vadd.f32 %v1226, %v1358
    %v1360 = vpop.f32.mrb[0].mxu0
    %v1361 = vpop.f32.mrb[0].mxu0
    %v1362 = vpop.f32.mrb[0].mxu0
    %1363 = vdwg.mxu0
    %1364 = vst [vmem:[#allocation18] sm:$0xff] %v1359
    %1365 = vrot.lane.b32.xlu0 %v1359, 64
    %v1366 = vpop.permute.xlu0 %1365
    %v1367 = vld [vmem:[#allocation5] sm:$0xff]
    %v1368 = vmul.f32 %v1366, 0.5
    %v1369 = vmul.f32 %v1368, 1.442695
    %v1370 = vpow.pop %v1369
    %v1371 = vmul.f32 %v1367, %v1370
    %v1372 = vadd.f32 %v1359, %v1371
    %v1373 = vpack.c.bf16 %v1372, %v1372
    %v1374 = vld [vmem:[#allocation11] sm:$0xff]
    %v1375 = vld [vmem:[#allocation11 + $0x8] sm:$0xff]
    %v1376 = vld [vmem:[#allocation11 + $0x10] sm:$0xff]
    %v1377 = vld [vmem:[#allocation11 + $0x18] sm:$0xff]
    %v1378 = vld [vmem:[#allocation11 + $0x20] sm:$0xff]
    %v1379 = vld [vmem:[#allocation11 + $0x28] sm:$0xff]
    %v1380 = vld [vmem:[#allocation11 + $0x30] sm:$0xff]
    %v1381 = vld [vmem:[#allocation11 + $0x38] sm:$0xff]
    %v1382 = vld [vmem:[#allocation11 + $0x40] sm:$0xff]
    %v1383 = vld [vmem:[#allocation11 + $0x48] sm:$0xff]
    %v1384 = vld [vmem:[#allocation11 + $0x50] sm:$0xff]
    %v1385 = vld [vmem:[#allocation11 + $0x58] sm:$0xff]
    %v1386 = vld [vmem:[#allocation11 + $0x60] sm:$0xff]
    %v1387 = vld [vmem:[#allocation11 + $0x68] sm:$0xff]
    %v1388 = vld [vmem:[#allocation11 + $0x70] sm:$0xff]
    %v1389 = vld [vmem:[#allocation11 + $0x78] sm:$0xff]
    %v1390 = vld [vmem:[%s9] sm:$0x3]
    %v1392 = vlaneseq
    %v1393 = vshrl.u32 %v1392, 7
    %v1394 = vsub.s32 0, %v1393
    %v1395 = vrot.slane %v1390, %v1394
    %v1396 = vlaneseq
    %v1397 = vshrl.u32 %v1396, 7
    %v1398 = vsub.s32 1, %v1397
    %v1399 = vrot.slane %v1390, %v1398
    %v1418 = vunpack.c.l.b16 %v1374
    %v1419 = vunpack.c.h.b16 %v1374
    %v1420 = vunpack.c.l.b16 %v1375
    %v1421 = vunpack.c.h.b16 %v1375
    %v1422 = vunpack.c.l.b16 %v1376
    %v1423 = vunpack.c.h.b16 %v1376
    %v1424 = vunpack.c.l.b16 %v1377
    %v1425 = vunpack.c.h.b16 %v1377
    %v1426 = vunpack.c.l.b16 %v1378
    %v1427 = vunpack.c.h.b16 %v1378
    %v1428 = vunpack.c.l.b16 %v1379
    %v1429 = vunpack.c.h.b16 %v1379
    %v1430 = vunpack.c.l.b16 %v1380
    %v1431 = vunpack.c.h.b16 %v1380
    %v1432 = vunpack.c.l.b16 %v1381
    %v1433 = vunpack.c.h.b16 %v1381
    %v1434 = vunpack.c.l.b16 %v1382
    %v1435 = vunpack.c.h.b16 %v1382
    %v1436 = vunpack.c.l.b16 %v1383
    %v1437 = vunpack.c.h.b16 %v1383
    %v1438 = vunpack.c.l.b16 %v1384
    %v1439 = vunpack.c.h.b16 %v1384
    %v1440 = vunpack.c.l.b16 %v1385
    %v1441 = vunpack.c.h.b16 %v1385
    %v1442 = vunpack.c.l.b16 %v1386
    %v1443 = vunpack.c.h.b16 %v1386
    %v1444 = vunpack.c.l.b16 %v1387
    %v1445 = vunpack.c.h.b16 %v1387
    %v1446 = vunpack.c.l.b16 %v1388
    %v1447 = vunpack.c.h.b16 %v1388
    %v1448 = vunpack.c.l.b16 %v1389
    %v1449 = vunpack.c.h.b16 %v1389
    %v1450 = vpack.c.b16 %v1420, %v1418
    %v1451 = vpack.c.b16 %v1421, %v1419
    %v1452 = vpack.c.b16 %v1424, %v1422
    %v1453 = vpack.c.b16 %v1425, %v1423
    %v1454 = vpack.c.b16 %v1428, %v1426
    %v1455 = vpack.c.b16 %v1429, %v1427
    %v1456 = vpack.c.b16 %v1432, %v1430
    %v1457 = vpack.c.b16 %v1433, %v1431
    %v1458 = vpack.c.b16 %v1436, %v1434
    %v1459 = vpack.c.b16 %v1437, %v1435
    %v1460 = vpack.c.b16 %v1440, %v1438
    %v1461 = vpack.c.b16 %v1441, %v1439
    %v1462 = vpack.c.b16 %v1444, %v1442
    %v1463 = vpack.c.b16 %v1445, %v1443
    %v1464 = vpack.c.b16 %v1448, %v1446
    %v1465 = vpack.c.b16 %v1449, %v1447
    %1482 = vmatprep.subr.bf16.mxu0 %v1451
    %1483 = vmatpush1.bf16.msra.mxu0 %v1450
    %1484 = vmatprep.subr.bf16.mxu0 %v1453
    %1485 = vmatpush1.bf16.msra.mxu0 %v1452
    %1486 = vmatprep.subr.bf16.mxu0 %v1455
    %1487 = vmatpush1.bf16.msra.mxu0 %v1454
    %1488 = vmatprep.subr.bf16.mxu0 %v1457
    %1489 = vmatpush1.bf16.msra.mxu0 %v1456
    %1490 = vmatprep.subr.bf16.mxu0 %v1459
    %1491 = vmatpush1.bf16.msra.mxu0 %v1458
    %1492 = vmatprep.subr.bf16.mxu0 %v1461
    %1493 = vmatpush1.bf16.msra.mxu0 %v1460
    %1494 = vmatprep.subr.bf16.mxu0 %v1463
    %1495 = vmatpush1.bf16.msra.mxu0 %v1462
    %1496 = vmatprep.subr.bf16.mxu0 %v1465
    %1497 = vmatpush1.bf16.msra.mxu0 %v1464
    %1498 = vmatprep.subr.bf16.mxu0 0
    %1499 = vmatpush1.bf16.msra.mxu0 0
    %1500 = vmatprep.subr.bf16.mxu0 0
    %1501 = vmatpush1.bf16.msra.mxu0 0
    %1502 = vmatprep.subr.bf16.mxu0 0
    %1503 = vmatpush1.bf16.msra.mxu0 0
    %1504 = vmatprep.subr.bf16.mxu0 0
    %1505 = vmatpush1.bf16.msra.mxu0 0
    %1506 = vmatprep.subr.bf16.mxu0 0
    %1507 = vmatpush1.bf16.msra.mxu0 0
    %1508 = vmatprep.subr.bf16.mxu0 0
    %1509 = vmatpush1.bf16.msra.mxu0 0
    %1510 = vmatprep.subr.bf16.mxu0 0
    %1511 = vmatpush1.bf16.msra.mxu0 0
    %1512 = vmatprep.subr.bf16.mxu0 0
    %1513 = vmatpush1.bf16.msra.mxu0 0
    %1514 = vmatprep.mubr.bf16.mxu0 0
    %1515 = vmatmul.mubr.bf16.gmra.mrb[0].mxu0 %v1373
    %v1516 = vpop.f32.mrb[0].mxu0
    %v1517 = vadd.f32 %v1395, %v1516
    %v1518 = vpop.f32.mrb[0].mxu0
    %v1519 = vadd.f32 %v1399, %v1518
    %v1520 = vpop.f32.mrb[0].mxu0
    %v1521 = vpop.f32.mrb[0].mxu0
    %1522 = vdwg.mxu0
    %vm1523 = vcmp.gt.f32.partialorder %v1517, 0.0
    %vm1524 = vcmp.gt.f32.partialorder %v1519, 0.0
    %v1525 = vmin.f32 %v1517, 0.0
    %v1526 = vmin.f32 %v1519, 0.0
    %v1527 = vmul.f32 %v1525, 1.442695
    %v1528 = vpow.pop %v1527
    %v1529 = vmul.f32 %v1526, 1.442695
    %v1530 = vpow.pop %v1529
    %v1531 = vsub.f32 %v1528, 1.0
    %v1532 = vsub.f32 %v1530, 1.0
    %v1533 = vsel %vm1523, %v1517, %v1531
    %v1534 = vsel %vm1524, %v1519, %v1532
    %v1535 = vpack.c.bf16 %v1533, %v1533
    %v1536 = vpack.c.bf16 %v1534, %v1534
    %v1537 = vld [vmem:[#allocation13] sm:$0xff]
    %v1538 = vld [vmem:[#allocation13 + $0x8] sm:$0xff]
    %v1539 = vld [vmem:[#allocation13 + $0x10] sm:$0xff]
    %v1540 = vld [vmem:[#allocation13 + $0x18] sm:$0xff]
    %v1541 = vld [vmem:[#allocation13 + $0x20] sm:$0xff]
    %v1542 = vld [vmem:[#allocation13 + $0x28] sm:$0xff]
    %v1543 = vld [vmem:[#allocation13 + $0x30] sm:$0xff]
    %v1544 = vld [vmem:[#allocation13 + $0x38] sm:$0xff]
    %v1545 = vld [vmem:[#allocation13 + $0x40] sm:$0xff]
    %v1546 = vld [vmem:[#allocation13 + $0x48] sm:$0xff]
    %v1547 = vld [vmem:[#allocation13 + $0x50] sm:$0xff]
    %v1548 = vld [vmem:[#allocation13 + $0x58] sm:$0xff]
    %v1549 = vld [vmem:[#allocation13 + $0x60] sm:$0xff]
    %v1550 = vld [vmem:[#allocation13 + $0x68] sm:$0xff]
    %v1551 = vld [vmem:[#allocation13 + $0x70] sm:$0xff]
    %v1552 = vld [vmem:[#allocation13 + $0x78] sm:$0xff]
    %v1553 = vld [vmem:[#allocation13 + $0x80] sm:$0xff]
    %v1554 = vld [vmem:[#allocation13 + $0x88] sm:$0xff]
    %v1555 = vld [vmem:[#allocation13 + $0x90] sm:$0xff]
    %v1556 = vld [vmem:[#allocation13 + $0x98] sm:$0xff]
    %v1557 = vld [vmem:[#allocation13 + $0xa0] sm:$0xff]
    %v1558 = vld [vmem:[#allocation13 + $0xa8] sm:$0xff]
    %v1559 = vld [vmem:[#allocation13 + $0xb0] sm:$0xff]
    %v1560 = vld [vmem:[#allocation13 + $0xb8] sm:$0xff]
    %v1561 = vld [vmem:[#allocation13 + $0xc0] sm:$0xff]
    %v1562 = vld [vmem:[#allocation13 + $0xc8] sm:$0xff]
    %v1563 = vld [vmem:[#allocation13 + $0xd0] sm:$0xff]
    %v1564 = vld [vmem:[#allocation13 + $0xd8] sm:$0xff]
    %v1565 = vld [vmem:[#allocation13 + $0xe0] sm:$0xff]
    %v1566 = vld [vmem:[#allocation13 + $0xe8] sm:$0xff]
    %v1567 = vld [vmem:[#allocation13 + $0xf0] sm:$0xff]
    %v1568 = vld [vmem:[#allocation13 + $0xf8] sm:$0xff]
    %v1569 = vld [vmem:[#allocation13 + $0x100] sm:$0xff]
    %v1570 = vld [vmem:[#allocation13 + $0x108] sm:$0xff]
    %v1571 = vld [vmem:[#allocation13 + $0x110] sm:$0xff]
    %v1572 = vld [vmem:[#allocation13 + $0x118] sm:$0xff]
    %v1573 = vld [vmem:[#allocation13 + $0x120] sm:$0xff]
    %v1574 = vld [vmem:[#allocation13 + $0x128] sm:$0xff]
    %v1575 = vld [vmem:[#allocation13 + $0x130] sm:$0xff]
    %v1576 = vld [vmem:[#allocation13 + $0x138] sm:$0xff]
    %v1577 = vld [vmem:[#allocation13 + $0x140] sm:$0xff]
    %v1578 = vld [vmem:[#allocation13 + $0x148] sm:$0xff]
    %v1579 = vld [vmem:[#allocation13 + $0x150] sm:$0xff]
    %v1580 = vld [vmem:[#allocation13 + $0x158] sm:$0xff]
    %v1581 = vld [vmem:[#allocation13 + $0x160] sm:$0xff]
    %v1582 = vld [vmem:[#allocation13 + $0x168] sm:$0xff]
    %v1583 = vld [vmem:[#allocation13 + $0x170] sm:$0xff]
    %v1584 = vld [vmem:[#allocation13 + $0x178] sm:$0xff]
    %v1585 = vld [vmem:[#allocation13 + $0x180] sm:$0xff]
    %v1586 = vld [vmem:[#allocation13 + $0x188] sm:$0xff]
    %v1587 = vld [vmem:[#allocation13 + $0x190] sm:$0xff]
    %v1588 = vld [vmem:[#allocation13 + $0x198] sm:$0xff]
    %v1589 = vld [vmem:[#allocation13 + $0x1a0] sm:$0xff]
    %v1590 = vld [vmem:[#allocation13 + $0x1a8] sm:$0xff]
    %v1591 = vld [vmem:[#allocation13 + $0x1b0] sm:$0xff]
    %v1592 = vld [vmem:[#allocation13 + $0x1b8] sm:$0xff]
    %v1593 = vld [vmem:[#allocation13 + $0x1c0] sm:$0xff]
    %v1594 = vld [vmem:[#allocation13 + $0x1c8] sm:$0xff]
    %v1595 = vld [vmem:[#allocation13 + $0x1d0] sm:$0xff]
    %v1596 = vld [vmem:[#allocation13 + $0x1d8] sm:$0xff]
    %v1597 = vld [vmem:[#allocation13 + $0x1e0] sm:$0xff]
    %v1598 = vld [vmem:[#allocation13 + $0x1e8] sm:$0xff]
    %v1599 = vld [vmem:[#allocation13 + $0x1f0] sm:$0xff]
    %v1600 = vld [vmem:[#allocation13 + $0x1f8] sm:$0xff]
    %v1601 = vld [vmem:[%s11] sm:$0xf]
    %v1603 = vlaneseq
    %v1604 = vshrl.u32 %v1603, 7
    %v1605 = vsub.s32 0, %v1604
    %v1606 = vrot.slane %v1601, %v1605
    %v1607 = vlaneseq
    %v1608 = vshrl.u32 %v1607, 7
    %v1609 = vsub.s32 1, %v1608
    %v1610 = vrot.slane %v1601, %v1609
    %v1611 = vlaneseq
    %v1612 = vshrl.u32 %v1611, 7
    %v1613 = vsub.s32 2, %v1612
    %v1614 = vrot.slane %v1601, %v1613
    %v1615 = vlaneseq
    %v1616 = vshrl.u32 %v1615, 7
    %v1617 = vsub.s32 3, %v1616
    %v1618 = vrot.slane %v1601, %v1617
    %v1687 = vunpack.c.l.b16 %v1537
    %v1688 = vunpack.c.h.b16 %v1537
    %v1689 = vunpack.c.l.b16 %v1538
    %v1690 = vunpack.c.h.b16 %v1538
    %v1691 = vunpack.c.l.b16 %v1539
    %v1692 = vunpack.c.h.b16 %v1539
    %v1693 = vunpack.c.l.b16 %v1540
    %v1694 = vunpack.c.h.b16 %v1540
    %v1695 = vunpack.c.l.b16 %v1541
    %v1696 = vunpack.c.h.b16 %v1541
    %v1697 = vunpack.c.l.b16 %v1542
    %v1698 = vunpack.c.h.b16 %v1542
    %v1699 = vunpack.c.l.b16 %v1543
    %v1700 = vunpack.c.h.b16 %v1543
    %v1701 = vunpack.c.l.b16 %v1544
    %v1702 = vunpack.c.h.b16 %v1544
    %v1703 = vunpack.c.l.b16 %v1545
    %v1704 = vunpack.c.h.b16 %v1545
    %v1705 = vunpack.c.l.b16 %v1546
    %v1706 = vunpack.c.h.b16 %v1546
    %v1707 = vunpack.c.l.b16 %v1547
    %v1708 = vunpack.c.h.b16 %v1547
    %v1709 = vunpack.c.l.b16 %v1548
    %v1710 = vunpack.c.h.b16 %v1548
    %v1711 = vunpack.c.l.b16 %v1549
    %v1712 = vunpack.c.h.b16 %v1549
    %v1713 = vunpack.c.l.b16 %v1550
    %v1714 = vunpack.c.h.b16 %v1550
    %v1715 = vunpack.c.l.b16 %v1551
    %v1716 = vunpack.c.h.b16 %v1551
    %v1717 = vunpack.c.l.b16 %v1552
    %v1718 = vunpack.c.h.b16 %v1552
    %v1719 = vunpack.c.l.b16 %v1553
    %v1720 = vunpack.c.h.b16 %v1553
    %v1721 = vunpack.c.l.b16 %v1554
    %v1722 = vunpack.c.h.b16 %v1554
    %v1723 = vunpack.c.l.b16 %v1555
    %v1724 = vunpack.c.h.b16 %v1555
    %v1725 = vunpack.c.l.b16 %v1556
    %v1726 = vunpack.c.h.b16 %v1556
    %v1727 = vunpack.c.l.b16 %v1557
    %v1728 = vunpack.c.h.b16 %v1557
    %v1729 = vunpack.c.l.b16 %v1558
    %v1730 = vunpack.c.h.b16 %v1558
    %v1731 = vunpack.c.l.b16 %v1559
    %v1732 = vunpack.c.h.b16 %v1559
    %v1733 = vunpack.c.l.b16 %v1560
    %v1734 = vunpack.c.h.b16 %v1560
    %v1735 = vunpack.c.l.b16 %v1561
    %v1736 = vunpack.c.h.b16 %v1561
    %v1737 = vunpack.c.l.b16 %v1562
    %v1738 = vunpack.c.h.b16 %v1562
    %v1739 = vunpack.c.l.b16 %v1563
    %v1740 = vunpack.c.h.b16 %v1563
    %v1741 = vunpack.c.l.b16 %v1564
    %v1742 = vunpack.c.h.b16 %v1564
    %v1743 = vunpack.c.l.b16 %v1565
    %v1744 = vunpack.c.h.b16 %v1565
    %v1745 = vunpack.c.l.b16 %v1566
    %v1746 = vunpack.c.h.b16 %v1566
    %v1747 = vunpack.c.l.b16 %v1567
    %v1748 = vunpack.c.h.b16 %v1567
    %v1749 = vunpack.c.l.b16 %v1568
    %v1750 = vunpack.c.h.b16 %v1568
    %v1751 = vunpack.c.l.b16 %v1569
    %v1752 = vunpack.c.h.b16 %v1569
    %v1753 = vunpack.c.l.b16 %v1570
    %v1754 = vunpack.c.h.b16 %v1570
    %v1755 = vunpack.c.l.b16 %v1571
    %v1756 = vunpack.c.h.b16 %v1571
    %v1757 = vunpack.c.l.b16 %v1572
    %v1758 = vunpack.c.h.b16 %v1572
    %v1759 = vunpack.c.l.b16 %v1573
    %v1760 = vunpack.c.h.b16 %v1573
    %v1761 = vunpack.c.l.b16 %v1574
    %v1762 = vunpack.c.h.b16 %v1574
    %v1763 = vunpack.c.l.b16 %v1575
    %v1764 = vunpack.c.h.b16 %v1575
    %v1765 = vunpack.c.l.b16 %v1576
    %v1766 = vunpack.c.h.b16 %v1576
    %v1767 = vunpack.c.l.b16 %v1577
    %v1768 = vunpack.c.h.b16 %v1577
    %v1769 = vunpack.c.l.b16 %v1578
    %v1770 = vunpack.c.h.b16 %v1578
    %v1771 = vunpack.c.l.b16 %v1579
    %v1772 = vunpack.c.h.b16 %v1579
    %v1773 = vunpack.c.l.b16 %v1580
    %v1774 = vunpack.c.h.b16 %v1580
    %v1775 = vunpack.c.l.b16 %v1581
    %v1776 = vunpack.c.h.b16 %v1581
    %v1777 = vunpack.c.l.b16 %v1582
    %v1778 = vunpack.c.h.b16 %v1582
    %v1779 = vunpack.c.l.b16 %v1583
    %v1780 = vunpack.c.h.b16 %v1583
    %v1781 = vunpack.c.l.b16 %v1584
    %v1782 = vunpack.c.h.b16 %v1584
    %v1783 = vunpack.c.l.b16 %v1585
    %v1784 = vunpack.c.h.b16 %v1585
    %v1785 = vunpack.c.l.b16 %v1586
    %v1786 = vunpack.c.h.b16 %v1586
    %v1787 = vunpack.c.l.b16 %v1587
    %v1788 = vunpack.c.h.b16 %v1587
    %v1789 = vunpack.c.l.b16 %v1588
    %v1790 = vunpack.c.h.b16 %v1588
    %v1791 = vunpack.c.l.b16 %v1589
    %v1792 = vunpack.c.h.b16 %v1589
    %v1793 = vunpack.c.l.b16 %v1590
    %v1794 = vunpack.c.h.b16 %v1590
    %v1795 = vunpack.c.l.b16 %v1591
    %v1796 = vunpack.c.h.b16 %v1591
    %v1797 = vunpack.c.l.b16 %v1592
    %v1798 = vunpack.c.h.b16 %v1592
    %v1799 = vunpack.c.l.b16 %v1593
    %v1800 = vunpack.c.h.b16 %v1593
    %v1801 = vunpack.c.l.b16 %v1594
    %v1802 = vunpack.c.h.b16 %v1594
    %v1803 = vunpack.c.l.b16 %v1595
    %v1804 = vunpack.c.h.b16 %v1595
    %v1805 = vunpack.c.l.b16 %v1596
    %v1806 = vunpack.c.h.b16 %v1596
    %v1807 = vunpack.c.l.b16 %v1597
    %v1808 = vunpack.c.h.b16 %v1597
    %v1809 = vunpack.c.l.b16 %v1598
    %v1810 = vunpack.c.h.b16 %v1598
    %v1811 = vunpack.c.l.b16 %v1599
    %v1812 = vunpack.c.h.b16 %v1599
    %v1813 = vunpack.c.l.b16 %v1600
    %v1814 = vunpack.c.h.b16 %v1600
    %v1815 = vpack.c.b16 %v1691, %v1687
    %v1816 = vpack.c.b16 %v1692, %v1688
    %v1817 = vpack.c.b16 %v1693, %v1689
    %v1818 = vpack.c.b16 %v1694, %v1690
    %v1819 = vpack.c.b16 %v1699, %v1695
    %v1820 = vpack.c.b16 %v1700, %v1696
    %v1821 = vpack.c.b16 %v1701, %v1697
    %v1822 = vpack.c.b16 %v1702, %v1698
    %v1823 = vpack.c.b16 %v1707, %v1703
    %v1824 = vpack.c.b16 %v1708, %v1704
    %v1825 = vpack.c.b16 %v1709, %v1705
    %v1826 = vpack.c.b16 %v1710, %v1706
    %v1827 = vpack.c.b16 %v1715, %v1711
    %v1828 = vpack.c.b16 %v1716, %v1712
    %v1829 = vpack.c.b16 %v1717, %v1713
    %v1830 = vpack.c.b16 %v1718, %v1714
    %v1831 = vpack.c.b16 %v1723, %v1719
    %v1832 = vpack.c.b16 %v1724, %v1720
    %v1833 = vpack.c.b16 %v1725, %v1721
    %v1834 = vpack.c.b16 %v1726, %v1722
    %v1835 = vpack.c.b16 %v1731, %v1727
    %v1836 = vpack.c.b16 %v1732, %v1728
    %v1837 = vpack.c.b16 %v1733, %v1729
    %v1838 = vpack.c.b16 %v1734, %v1730
    %v1839 = vpack.c.b16 %v1739, %v1735
    %v1840 = vpack.c.b16 %v1740, %v1736
    %v1841 = vpack.c.b16 %v1741, %v1737
    %v1842 = vpack.c.b16 %v1742, %v1738
    %v1843 = vpack.c.b16 %v1747, %v1743
    %v1844 = vpack.c.b16 %v1748, %v1744
    %v1845 = vpack.c.b16 %v1749, %v1745
    %v1846 = vpack.c.b16 %v1750, %v1746
    %v1847 = vpack.c.b16 %v1755, %v1751
    %v1848 = vpack.c.b16 %v1756, %v1752
    %v1849 = vpack.c.b16 %v1757, %v1753
    %v1850 = vpack.c.b16 %v1758, %v1754
    %v1851 = vpack.c.b16 %v1763, %v1759
    %v1852 = vpack.c.b16 %v1764, %v1760
    %v1853 = vpack.c.b16 %v1765, %v1761
    %v1854 = vpack.c.b16 %v1766, %v1762
    %v1855 = vpack.c.b16 %v1771, %v1767
    %v1856 = vpack.c.b16 %v1772, %v1768
    %v1857 = vpack.c.b16 %v1773, %v1769
    %v1858 = vpack.c.b16 %v1774, %v1770
    %v1859 = vpack.c.b16 %v1779, %v1775
    %v1860 = vpack.c.b16 %v1780, %v1776
    %v1861 = vpack.c.b16 %v1781, %v1777
    %v1862 = vpack.c.b16 %v1782, %v1778
    %v1863 = vpack.c.b16 %v1787, %v1783
    %v1864 = vpack.c.b16 %v1788, %v1784
    %v1865 = vpack.c.b16 %v1789, %v1785
    %v1866 = vpack.c.b16 %v1790, %v1786
    %v1867 = vpack.c.b16 %v1795, %v1791
    %v1868 = vpack.c.b16 %v1796, %v1792
    %v1869 = vpack.c.b16 %v1797, %v1793
    %v1870 = vpack.c.b16 %v1798, %v1794
    %v1871 = vpack.c.b16 %v1803, %v1799
    %v1872 = vpack.c.b16 %v1804, %v1800
    %v1873 = vpack.c.b16 %v1805, %v1801
    %v1874 = vpack.c.b16 %v1806, %v1802
    %v1875 = vpack.c.b16 %v1811, %v1807
    %v1876 = vpack.c.b16 %v1812, %v1808
    %v1877 = vpack.c.b16 %v1813, %v1809
    %v1878 = vpack.c.b16 %v1814, %v1810
    %1943 = vmatprep.subr.bf16.mxu0 %v1816
    %1944 = vmatpush1.bf16.msra.mxu0 %v1815
    %1945 = vmatprep.subr.bf16.mxu0 %v1820
    %1946 = vmatpush1.bf16.msra.mxu0 %v1819
    %1947 = vmatprep.subr.bf16.mxu0 %v1824
    %1948 = vmatpush1.bf16.msra.mxu0 %v1823
    %1949 = vmatprep.subr.bf16.mxu0 %v1828
    %1950 = vmatpush1.bf16.msra.mxu0 %v1827
    %1951 = vmatprep.subr.bf16.mxu0 %v1832
    %1952 = vmatpush1.bf16.msra.mxu0 %v1831
    %1953 = vmatprep.subr.bf16.mxu0 %v1836
    %1954 = vmatpush1.bf16.msra.mxu0 %v1835
    %1955 = vmatprep.subr.bf16.mxu0 %v1840
    %1956 = vmatpush1.bf16.msra.mxu0 %v1839
    %1957 = vmatprep.subr.bf16.mxu0 %v1844
    %1958 = vmatpush1.bf16.msra.mxu0 %v1843
    %1959 = vmatprep.subr.bf16.mxu0 %v1848
    %1960 = vmatpush1.bf16.msra.mxu0 %v1847
    %1961 = vmatprep.subr.bf16.mxu0 %v1852
    %1962 = vmatpush1.bf16.msra.mxu0 %v1851
    %1963 = vmatprep.subr.bf16.mxu0 %v1856
    %1964 = vmatpush1.bf16.msra.mxu0 %v1855
    %1965 = vmatprep.subr.bf16.mxu0 %v1860
    %1966 = vmatpush1.bf16.msra.mxu0 %v1859
    %1967 = vmatprep.subr.bf16.mxu0 %v1864
    %1968 = vmatpush1.bf16.msra.mxu0 %v1863
    %1969 = vmatprep.subr.bf16.mxu0 %v1868
    %1970 = vmatpush1.bf16.msra.mxu0 %v1867
    %1971 = vmatprep.subr.bf16.mxu0 %v1872
    %1972 = vmatpush1.bf16.msra.mxu0 %v1871
    %1973 = vmatprep.subr.bf16.mxu0 %v1876
    %1974 = vmatpush1.bf16.msra.mxu0 %v1875
    %1975 = vmatprep.mubr.bf16.mxu0 %v1536
    %1976 = vmatmul.mubr.bf16.gmra.mrb[0].mxu0 %v1535
    %v1977 = vpop.f32.mrb[0].mxu0
    %v1978 = vadd.f32 %v1606, %v1977
    %v1979 = vpop.f32.mrb[0].mxu0
    %v1980 = vadd.f32 %v1610, %v1979
    %v1981 = vpop.f32.mrb[0].mxu0
    %v1982 = vpop.f32.mrb[0].mxu0
    %1983 = vdwg.mxu0
    %1984 = vmatprep.subr.bf16.mxu0 %v1818
    %1985 = vmatpush1.bf16.msra.mxu0 %v1817
    %1986 = vmatprep.subr.bf16.mxu0 %v1822
    %1987 = vmatpush1.bf16.msra.mxu0 %v1821
    %1988 = vmatprep.subr.bf16.mxu0 %v1826
    %1989 = vmatpush1.bf16.msra.mxu0 %v1825
    %1990 = vmatprep.subr.bf16.mxu0 %v1830
    %1991 = vmatpush1.bf16.msra.mxu0 %v1829
    %1992 = vmatprep.subr.bf16.mxu0 %v1834
    %1993 = vmatpush1.bf16.msra.mxu0 %v1833
    %1994 = vmatprep.subr.bf16.mxu0 %v1838
    %1995 = vmatpush1.bf16.msra.mxu0 %v1837
    %1996 = vmatprep.subr.bf16.mxu0 %v1842
    %1997 = vmatpush1.bf16.msra.mxu0 %v1841
    %1998 = vmatprep.subr.bf16.mxu0 %v1846
    %1999 = vmatpush1.bf16.msra.mxu0 %v1845
    %2000 = vmatprep.subr.bf16.mxu0 %v1850
    %2001 = vmatpush1.bf16.msra.mxu0 %v1849
    %2002 = vmatprep.subr.bf16.mxu0 %v1854
    %2003 = vmatpush1.bf16.msra.mxu0 %v1853
    %2004 = vmatprep.subr.bf16.mxu0 %v1858
    %2005 = vmatpush1.bf16.msra.mxu0 %v1857
    %2006 = vmatprep.subr.bf16.mxu0 %v1862
    %2007 = vmatpush1.bf16.msra.mxu0 %v1861
    %2008 = vmatprep.subr.bf16.mxu0 %v1866
    %2009 = vmatpush1.bf16.msra.mxu0 %v1865
    %2010 = vmatprep.subr.bf16.mxu0 %v1870
    %2011 = vmatpush1.bf16.msra.mxu0 %v1869
    %2012 = vmatprep.subr.bf16.mxu0 %v1874
    %2013 = vmatpush1.bf16.msra.mxu0 %v1873
    %2014 = vmatprep.subr.bf16.mxu0 %v1878
    %2015 = vmatpush1.bf16.msra.mxu0 %v1877
    %2016 = vmatprep.mubr.bf16.mxu0 %v1536
    %2017 = vmatmul.mubr.bf16.gmra.mrb[0].mxu0 %v1535
    %v2018 = vpop.f32.mrb[0].mxu0
    %v2019 = vadd.f32 %v1614, %v2018
    %v2020 = vpop.f32.mrb[0].mxu0
    %v2021 = vadd.f32 %v1618, %v2020
    %v2022 = vpop.f32.mrb[0].mxu0
    %v2023 = vpop.f32.mrb[0].mxu0
    %2024 = vdwg.mxu0
    %vm2025 = vcmp.gt.f32.partialorder %v1978, 0.0
    %vm2026 = vcmp.gt.f32.partialorder %v1980, 0.0
    %vm2027 = vcmp.gt.f32.partialorder %v2019, 0.0
    %vm2028 = vcmp.gt.f32.partialorder %v2021, 0.0
    %v2029 = vmin.f32 %v1978, 0.0
    %v2030 = vmin.f32 %v1980, 0.0
    %v2031 = vmin.f32 %v2019, 0.0
    %v2032 = vmin.f32 %v2021, 0.0
    %v2033 = vmul.f32 %v2029, 1.442695
    %v2034 = vpow.pop %v2033
    %v2035 = vmul.f32 %v2030, 1.442695
    %v2036 = vpow.pop %v2035
    %v2037 = vmul.f32 %v2031, 1.442695
    %v2038 = vpow.pop %v2037
    %v2039 = vmul.f32 %v2032, 1.442695
    %v2040 = vpow.pop %v2039
    %v2041 = vsub.f32 %v2034, 1.0
    %v2042 = vsub.f32 %v2036, 1.0
    %v2043 = vsub.f32 %v2038, 1.0
    %v2044 = vsub.f32 %v2040, 1.0
    %v2045 = vsel %vm2025, %v1978, %v2041
    %v2046 = vsel %vm2026, %v1980, %v2042
    %v2047 = vsel %vm2027, %v2019, %v2043
    %v2048 = vsel %vm2028, %v2021, %v2044
    %v2049 = vpack.c.bf16 %v2045, %v2045
    %v2050 = vpack.c.bf16 %v2046, %v2046
    %v2051 = vpack.c.bf16 %v2047, %v2047
    %v2052 = vpack.c.bf16 %v2048, %v2048
    %v2053 = vld [vmem:[#allocation14] sm:$0xff]
    %v2054 = vld [vmem:[#allocation14 + $0x8] sm:$0xff]
    %v2055 = vld [vmem:[#allocation14 + $0x10] sm:$0xff]
    %v2056 = vld [vmem:[#allocation14 + $0x18] sm:$0xff]
    %v2057 = vld [vmem:[#allocation14 + $0x20] sm:$0xff]
    %v2058 = vld [vmem:[#allocation14 + $0x28] sm:$0xff]
    %v2059 = vld [vmem:[#allocation14 + $0x30] sm:$0xff]
    %v2060 = vld [vmem:[#allocation14 + $0x38] sm:$0xff]
    %v2061 = vld [vmem:[#allocation14 + $0x40] sm:$0xff]
    %v2062 = vld [vmem:[#allocation14 + $0x48] sm:$0xff]
    %v2063 = vld [vmem:[#allocation14 + $0x50] sm:$0xff]
    %v2064 = vld [vmem:[#allocation14 + $0x58] sm:$0xff]
    %v2065 = vld [vmem:[#allocation14 + $0x60] sm:$0xff]
    %v2066 = vld [vmem:[#allocation14 + $0x68] sm:$0xff]
    %v2067 = vld [vmem:[#allocation14 + $0x70] sm:$0xff]
    %v2068 = vld [vmem:[#allocation14 + $0x78] sm:$0xff]
    %v2069 = vld [vmem:[#allocation14 + $0x80] sm:$0xff]
    %v2070 = vld [vmem:[#allocation14 + $0x88] sm:$0xff]
    %v2071 = vld [vmem:[#allocation14 + $0x90] sm:$0xff]
    %v2072 = vld [vmem:[#allocation14 + $0x98] sm:$0xff]
    %v2073 = vld [vmem:[#allocation14 + $0xa0] sm:$0xff]
    %v2074 = vld [vmem:[#allocation14 + $0xa8] sm:$0xff]
    %v2075 = vld [vmem:[#allocation14 + $0xb0] sm:$0xff]
    %v2076 = vld [vmem:[#allocation14 + $0xb8] sm:$0xff]
    %v2077 = vld [vmem:[#allocation14 + $0xc0] sm:$0xff]
    %v2078 = vld [vmem:[#allocation14 + $0xc8] sm:$0xff]
    %v2079 = vld [vmem:[#allocation14 + $0xd0] sm:$0xff]
    %v2080 = vld [vmem:[#allocation14 + $0xd8] sm:$0xff]
    %v2081 = vld [vmem:[#allocation14 + $0xe0] sm:$0xff]
    %v2082 = vld [vmem:[#allocation14 + $0xe8] sm:$0xff]
    %v2083 = vld [vmem:[#allocation14 + $0xf0] sm:$0xff]
    %v2084 = vld [vmem:[#allocation14 + $0xf8] sm:$0xff]
    %v2085 = vld [vmem:[#allocation14 + $0x100] sm:$0xff]
    %v2086 = vld [vmem:[#allocation14 + $0x108] sm:$0xff]
    %v2087 = vld [vmem:[#allocation14 + $0x110] sm:$0xff]
    %v2088 = vld [vmem:[#allocation14 + $0x118] sm:$0xff]
    %v2089 = vld [vmem:[#allocation14 + $0x120] sm:$0xff]
    %v2090 = vld [vmem:[#allocation14 + $0x128] sm:$0xff]
    %v2091 = vld [vmem:[#allocation14 + $0x130] sm:$0xff]
    %v2092 = vld [vmem:[#allocation14 + $0x138] sm:$0xff]
    %v2093 = vld [vmem:[#allocation14 + $0x140] sm:$0xff]
    %v2094 = vld [vmem:[#allocation14 + $0x148] sm:$0xff]
    %v2095 = vld [vmem:[#allocation14 + $0x150] sm:$0xff]
    %v2096 = vld [vmem:[#allocation14 + $0x158] sm:$0xff]
    %v2097 = vld [vmem:[#allocation14 + $0x160] sm:$0xff]
    %v2098 = vld [vmem:[#allocation14 + $0x168] sm:$0xff]
    %v2099 = vld [vmem:[#allocation14 + $0x170] sm:$0xff]
    %v2100 = vld [vmem:[#allocation14 + $0x178] sm:$0xff]
    %v2101 = vld [vmem:[#allocation14 + $0x180] sm:$0xff]
    %v2102 = vld [vmem:[#allocation14 + $0x188] sm:$0xff]
    %v2103 = vld [vmem:[#allocation14 + $0x190] sm:$0xff]
    %v2104 = vld [vmem:[#allocation14 + $0x198] sm:$0xff]
    %v2105 = vld [vmem:[#allocation14 + $0x1a0] sm:$0xff]
    %v2106 = vld [vmem:[#allocation14 + $0x1a8] sm:$0xff]
    %v2107 = vld [vmem:[#allocation14 + $0x1b0] sm:$0xff]
    %v2108 = vld [vmem:[#allocation14 + $0x1b8] sm:$0xff]
    %v2109 = vld [vmem:[#allocation14 + $0x1c0] sm:$0xff]
    %v2110 = vld [vmem:[#allocation14 + $0x1c8] sm:$0xff]
    %v2111 = vld [vmem:[#allocation14 + $0x1d0] sm:$0xff]
    %v2112 = vld [vmem:[#allocation14 + $0x1d8] sm:$0xff]
    %v2113 = vld [vmem:[#allocation14 + $0x1e0] sm:$0xff]
    %v2114 = vld [vmem:[#allocation14 + $0x1e8] sm:$0xff]
    %v2115 = vld [vmem:[#allocation14 + $0x1f0] sm:$0xff]
    %v2116 = vld [vmem:[#allocation14 + $0x1f8] sm:$0xff]
    %v2117 = vld [vmem:[%s13] sm:$0x3]
    %v2119 = vlaneseq
    %v2120 = vshrl.u32 %v2119, 7
    %v2121 = vsub.s32 0, %v2120
    %v2122 = vrot.slane %v2117, %v2121
    %v2123 = vlaneseq
    %v2124 = vshrl.u32 %v2123, 7
    %v2125 = vsub.s32 1, %v2124
    %v2126 = vrot.slane %v2117, %v2125
    %v2193 = vunpack.c.l.b16 %v2053
    %v2194 = vunpack.c.h.b16 %v2053
    %v2195 = vunpack.c.l.b16 %v2054
    %v2196 = vunpack.c.h.b16 %v2054
    %v2197 = vunpack.c.l.b16 %v2055
    %v2198 = vunpack.c.h.b16 %v2055
    %v2199 = vunpack.c.l.b16 %v2056
    %v2200 = vunpack.c.h.b16 %v2056
    %v2201 = vunpack.c.l.b16 %v2057
    %v2202 = vunpack.c.h.b16 %v2057
    %v2203 = vunpack.c.l.b16 %v2058
    %v2204 = vunpack.c.h.b16 %v2058
    %v2205 = vunpack.c.l.b16 %v2059
    %v2206 = vunpack.c.h.b16 %v2059
    %v2207 = vunpack.c.l.b16 %v2060
    %v2208 = vunpack.c.h.b16 %v2060
    %v2209 = vunpack.c.l.b16 %v2061
    %v2210 = vunpack.c.h.b16 %v2061
    %v2211 = vunpack.c.l.b16 %v2062
    %v2212 = vunpack.c.h.b16 %v2062
    %v2213 = vunpack.c.l.b16 %v2063
    %v2214 = vunpack.c.h.b16 %v2063
    %v2215 = vunpack.c.l.b16 %v2064
    %v2216 = vunpack.c.h.b16 %v2064
    %v2217 = vunpack.c.l.b16 %v2065
    %v2218 = vunpack.c.h.b16 %v2065
    %v2219 = vunpack.c.l.b16 %v2066
    %v2220 = vunpack.c.h.b16 %v2066
    %v2221 = vunpack.c.l.b16 %v2067
    %v2222 = vunpack.c.h.b16 %v2067
    %v2223 = vunpack.c.l.b16 %v2068
    %v2224 = vunpack.c.h.b16 %v2068
    %v2225 = vunpack.c.l.b16 %v2069
    %v2226 = vunpack.c.h.b16 %v2069
    %v2227 = vunpack.c.l.b16 %v2070
    %v2228 = vunpack.c.h.b16 %v2070
    %v2229 = vunpack.c.l.b16 %v2071
    %v2230 = vunpack.c.h.b16 %v2071
    %v2231 = vunpack.c.l.b16 %v2072
    %v2232 = vunpack.c.h.b16 %v2072
    %v2233 = vunpack.c.l.b16 %v2073
    %v2234 = vunpack.c.h.b16 %v2073
    %v2235 = vunpack.c.l.b16 %v2074
    %v2236 = vunpack.c.h.b16 %v2074
    %v2237 = vunpack.c.l.b16 %v2075
    %v2238 = vunpack.c.h.b16 %v2075
    %v2239 = vunpack.c.l.b16 %v2076
    %v2240 = vunpack.c.h.b16 %v2076
    %v2241 = vunpack.c.l.b16 %v2077
    %v2242 = vunpack.c.h.b16 %v2077
    %v2243 = vunpack.c.l.b16 %v2078
    %v2244 = vunpack.c.h.b16 %v2078
    %v2245 = vunpack.c.l.b16 %v2079
    %v2246 = vunpack.c.h.b16 %v2079
    %v2247 = vunpack.c.l.b16 %v2080
    %v2248 = vunpack.c.h.b16 %v2080
    %v2249 = vunpack.c.l.b16 %v2081
    %v2250 = vunpack.c.h.b16 %v2081
    %v2251 = vunpack.c.l.b16 %v2082
    %v2252 = vunpack.c.h.b16 %v2082
    %v2253 = vunpack.c.l.b16 %v2083
    %v2254 = vunpack.c.h.b16 %v2083
    %v2255 = vunpack.c.l.b16 %v2084
    %v2256 = vunpack.c.h.b16 %v2084
    %v2257 = vunpack.c.l.b16 %v2085
    %v2258 = vunpack.c.h.b16 %v2085
    %v2259 = vunpack.c.l.b16 %v2086
    %v2260 = vunpack.c.h.b16 %v2086
    %v2261 = vunpack.c.l.b16 %v2087
    %v2262 = vunpack.c.h.b16 %v2087
    %v2263 = vunpack.c.l.b16 %v2088
    %v2264 = vunpack.c.h.b16 %v2088
    %v2265 = vunpack.c.l.b16 %v2089
    %v2266 = vunpack.c.h.b16 %v2089
    %v2267 = vunpack.c.l.b16 %v2090
    %v2268 = vunpack.c.h.b16 %v2090
    %v2269 = vunpack.c.l.b16 %v2091
    %v2270 = vunpack.c.h.b16 %v2091
    %v2271 = vunpack.c.l.b16 %v2092
    %v2272 = vunpack.c.h.b16 %v2092
    %v2273 = vunpack.c.l.b16 %v2093
    %v2274 = vunpack.c.h.b16 %v2093
    %v2275 = vunpack.c.l.b16 %v2094
    %v2276 = vunpack.c.h.b16 %v2094
    %v2277 = vunpack.c.l.b16 %v2095
    %v2278 = vunpack.c.h.b16 %v2095
    %v2279 = vunpack.c.l.b16 %v2096
    %v2280 = vunpack.c.h.b16 %v2096
    %v2281 = vunpack.c.l.b16 %v2097
    %v2282 = vunpack.c.h.b16 %v2097
    %v2283 = vunpack.c.l.b16 %v2098
    %v2284 = vunpack.c.h.b16 %v2098
    %v2285 = vunpack.c.l.b16 %v2099
    %v2286 = vunpack.c.h.b16 %v2099
    %v2287 = vunpack.c.l.b16 %v2100
    %v2288 = vunpack.c.h.b16 %v2100
    %v2289 = vunpack.c.l.b16 %v2101
    %v2290 = vunpack.c.h.b16 %v2101
    %v2291 = vunpack.c.l.b16 %v2102
    %v2292 = vunpack.c.h.b16 %v2102
    %v2293 = vunpack.c.l.b16 %v2103
    %v2294 = vunpack.c.h.b16 %v2103
    %v2295 = vunpack.c.l.b16 %v2104
    %v2296 = vunpack.c.h.b16 %v2104
    %v2297 = vunpack.c.l.b16 %v2105
    %v2298 = vunpack.c.h.b16 %v2105
    %v2299 = vunpack.c.l.b16 %v2106
    %v2300 = vunpack.c.h.b16 %v2106
    %v2301 = vunpack.c.l.b16 %v2107
    %v2302 = vunpack.c.h.b16 %v2107
    %v2303 = vunpack.c.l.b16 %v2108
    %v2304 = vunpack.c.h.b16 %v2108
    %v2305 = vunpack.c.l.b16 %v2109
    %v2306 = vunpack.c.h.b16 %v2109
    %v2307 = vunpack.c.l.b16 %v2110
    %v2308 = vunpack.c.h.b16 %v2110
    %v2309 = vunpack.c.l.b16 %v2111
    %v2310 = vunpack.c.h.b16 %v2111
    %v2311 = vunpack.c.l.b16 %v2112
    %v2312 = vunpack.c.h.b16 %v2112
    %v2313 = vunpack.c.l.b16 %v2113
    %v2314 = vunpack.c.h.b16 %v2113
    %v2315 = vunpack.c.l.b16 %v2114
    %v2316 = vunpack.c.h.b16 %v2114
    %v2317 = vunpack.c.l.b16 %v2115
    %v2318 = vunpack.c.h.b16 %v2115
    %v2319 = vunpack.c.l.b16 %v2116
    %v2320 = vunpack.c.h.b16 %v2116
    %v2321 = vpack.c.b16 %v2195, %v2193
    %v2322 = vpack.c.b16 %v2196, %v2194
    %v2323 = vpack.c.b16 %v2199, %v2197
    %v2324 = vpack.c.b16 %v2200, %v2198
    %v2325 = vpack.c.b16 %v2203, %v2201
    %v2326 = vpack.c.b16 %v2204, %v2202
    %v2327 = vpack.c.b16 %v2207, %v2205
    %v2328 = vpack.c.b16 %v2208, %v2206
    %v2329 = vpack.c.b16 %v2211, %v2209
    %v2330 = vpack.c.b16 %v2212, %v2210
    %v2331 = vpack.c.b16 %v2215, %v2213
    %v2332 = vpack.c.b16 %v2216, %v2214
    %v2333 = vpack.c.b16 %v2219, %v2217
    %v2334 = vpack.c.b16 %v2220, %v2218
    %v2335 = vpack.c.b16 %v2223, %v2221
    %v2336 = vpack.c.b16 %v2224, %v2222
    %v2337 = vpack.c.b16 %v2227, %v2225
    %v2338 = vpack.c.b16 %v2228, %v2226
    %v2339 = vpack.c.b16 %v2231, %v2229
    %v2340 = vpack.c.b16 %v2232, %v2230
    %v2341 = vpack.c.b16 %v2235, %v2233
    %v2342 = vpack.c.b16 %v2236, %v2234
    %v2343 = vpack.c.b16 %v2239, %v2237
    %v2344 = vpack.c.b16 %v2240, %v2238
    %v2345 = vpack.c.b16 %v2243, %v2241
    %v2346 = vpack.c.b16 %v2244, %v2242
    %v2347 = vpack.c.b16 %v2247, %v2245
    %v2348 = vpack.c.b16 %v2248, %v2246
    %v2349 = vpack.c.b16 %v2251, %v2249
    %v2350 = vpack.c.b16 %v2252, %v2250
    %v2351 = vpack.c.b16 %v2255, %v2253
    %v2352 = vpack.c.b16 %v2256, %v2254
    %v2353 = vpack.c.b16 %v2259, %v2257
    %v2354 = vpack.c.b16 %v2260, %v2258
    %v2355 = vpack.c.b16 %v2263, %v2261
    %v2356 = vpack.c.b16 %v2264, %v2262
    %v2357 = vpack.c.b16 %v2267, %v2265
    %v2358 = vpack.c.b16 %v2268, %v2266
    %v2359 = vpack.c.b16 %v2271, %v2269
    %v2360 = vpack.c.b16 %v2272, %v2270
    %v2361 = vpack.c.b16 %v2275, %v2273
    %v2362 = vpack.c.b16 %v2276, %v2274
    %v2363 = vpack.c.b16 %v2279, %v2277
    %v2364 = vpack.c.b16 %v2280, %v2278
    %v2365 = vpack.c.b16 %v2283, %v2281
    %v2366 = vpack.c.b16 %v2284, %v2282
    %v2367 = vpack.c.b16 %v2287, %v2285
    %v2368 = vpack.c.b16 %v2288, %v2286
    %v2369 = vpack.c.b16 %v2291, %v2289
    %v2370 = vpack.c.b16 %v2292, %v2290
    %v2371 = vpack.c.b16 %v2295, %v2293
    %v2372 = vpack.c.b16 %v2296, %v2294
    %v2373 = vpack.c.b16 %v2299, %v2297
    %v2374 = vpack.c.b16 %v2300, %v2298
    %v2375 = vpack.c.b16 %v2303, %v2301
    %v2376 = vpack.c.b16 %v2304, %v2302
    %v2377 = vpack.c.b16 %v2307, %v2305
    %v2378 = vpack.c.b16 %v2308, %v2306
    %v2379 = vpack.c.b16 %v2311, %v2309
    %v2380 = vpack.c.b16 %v2312, %v2310
    %v2381 = vpack.c.b16 %v2315, %v2313
    %v2382 = vpack.c.b16 %v2316, %v2314
    %v2383 = vpack.c.b16 %v2319, %v2317
    %v2384 = vpack.c.b16 %v2320, %v2318
    %2449 = vmatprep.subr.bf16.mxu0 %v2322
    %2450 = vmatpush1.bf16.msra.mxu0 %v2321
    %2451 = vmatprep.subr.bf16.mxu0 %v2324
    %2452 = vmatpush1.bf16.msra.mxu0 %v2323
    %2453 = vmatprep.subr.bf16.mxu0 %v2326
    %2454 = vmatpush1.bf16.msra.mxu0 %v2325
    %2455 = vmatprep.subr.bf16.mxu0 %v2328
    %2456 = vmatpush1.bf16.msra.mxu0 %v2327
    %2457 = vmatprep.subr.bf16.mxu0 %v2330
    %2458 = vmatpush1.bf16.msra.mxu0 %v2329
    %2459 = vmatprep.subr.bf16.mxu0 %v2332
    %2460 = vmatpush1.bf16.msra.mxu0 %v2331
    %2461 = vmatprep.subr.bf16.mxu0 %v2334
    %2462 = vmatpush1.bf16.msra.mxu0 %v2333
    %2463 = vmatprep.subr.bf16.mxu0 %v2336
    %2464 = vmatpush1.bf16.msra.mxu0 %v2335
    %2465 = vmatprep.subr.bf16.mxu0 %v2338
    %2466 = vmatpush1.bf16.msra.mxu0 %v2337
    %2467 = vmatprep.subr.bf16.mxu0 %v2340
    %2468 = vmatpush1.bf16.msra.mxu0 %v2339
    %2469 = vmatprep.subr.bf16.mxu0 %v2342
    %2470 = vmatpush1.bf16.msra.mxu0 %v2341
    %2471 = vmatprep.subr.bf16.mxu0 %v2344
    %2472 = vmatpush1.bf16.msra.mxu0 %v2343
    %2473 = vmatprep.subr.bf16.mxu0 %v2346
    %2474 = vmatpush1.bf16.msra.mxu0 %v2345
    %2475 = vmatprep.subr.bf16.mxu0 %v2348
    %2476 = vmatpush1.bf16.msra.mxu0 %v2347
    %2477 = vmatprep.subr.bf16.mxu0 %v2350
    %2478 = vmatpush1.bf16.msra.mxu0 %v2349
    %2479 = vmatprep.subr.bf16.mxu0 %v2352
    %2480 = vmatpush1.bf16.msra.mxu0 %v2351
    %2481 = vmatprep.mubr.bf16.mxu0 %v2050
    %2482 = vmatmul.mubr.bf16.gmra.mrb[0].mxu0 %v2049
    %v2483 = vpop.f32.mrb[0].mxu0
    %v2484 = vadd.f32 %v2122, %v2483
    %v2485 = vpop.f32.mrb[0].mxu0
    %v2486 = vadd.f32 %v2126, %v2485
    %v2487 = vpop.f32.mrb[0].mxu0
    %v2488 = vpop.f32.mrb[0].mxu0
    %2489 = vdwg.mxu0
    %2490 = vmatprep.subr.bf16.mxu0 %v2354
    %2491 = vmatpush1.bf16.msra.mxu0 %v2353
    %2492 = vmatprep.subr.bf16.mxu0 %v2356
    %2493 = vmatpush1.bf16.msra.mxu0 %v2355
    %2494 = vmatprep.subr.bf16.mxu0 %v2358
    %2495 = vmatpush1.bf16.msra.mxu0 %v2357
    %2496 = vmatprep.subr.bf16.mxu0 %v2360
    %2497 = vmatpush1.bf16.msra.mxu0 %v2359
    %2498 = vmatprep.subr.bf16.mxu0 %v2362
    %2499 = vmatpush1.bf16.msra.mxu0 %v2361
    %2500 = vmatprep.subr.bf16.mxu0 %v2364
    %2501 = vmatpush1.bf16.msra.mxu0 %v2363
    %2502 = vmatprep.subr.bf16.mxu0 %v2366
    %2503 = vmatpush1.bf16.msra.mxu0 %v2365
    %2504 = vmatprep.subr.bf16.mxu0 %v2368
    %2505 = vmatpush1.bf16.msra.mxu0 %v2367
    %2506 = vmatprep.subr.bf16.mxu0 %v2370
    %2507 = vmatpush1.bf16.msra.mxu0 %v2369
    %2508 = vmatprep.subr.bf16.mxu0 %v2372
    %2509 = vmatpush1.bf16.msra.mxu0 %v2371
    %2510 = vmatprep.subr.bf16.mxu0 %v2374
    %2511 = vmatpush1.bf16.msra.mxu0 %v2373
    %2512 = vmatprep.subr.bf16.mxu0 %v2376
    %2513 = vmatpush1.bf16.msra.mxu0 %v2375
    %2514 = vmatprep.subr.bf16.mxu0 %v2378
    %2515 = vmatpush1.bf16.msra.mxu0 %v2377
    %2516 = vmatprep.subr.bf16.mxu0 %v2380
    %2517 = vmatpush1.bf16.msra.mxu0 %v2379
    %2518 = vmatprep.subr.bf16.mxu0 %v2382
    %2519 = vmatpush1.bf16.msra.mxu0 %v2381
    %2520 = vmatprep.subr.bf16.mxu0 %v2384
    %2521 = vmatpush1.bf16.msra.mxu0 %v2383
    %2522 = vmatprep.mubr.bf16.mxu0 %v2052
    %2523 = vmatmul.mubr.bf16.gmra.mrb[0].mxu0 %v2051
    %v2524 = vpop.f32.mrb[0].mxu0
    %v2525 = vadd.f32 %v2484, %v2524
    %v2526 = vpop.f32.mrb[0].mxu0
    %v2527 = vadd.f32 %v2486, %v2526
    %v2528 = vpop.f32.mrb[0].mxu0
    %v2529 = vpop.f32.mrb[0].mxu0
    %2530 = vdwg.mxu0
    %v2531 = vmax.f32 %v2525, %v2527
    %2532 = vmax.xlane.f32.xlu0 %v2531
    %v2533 = vpop.xlane.xlu0 %2532
    %v2534 = vsub.f32 %v2525, %v2533
    %v2535 = vsub.f32 %v2527, %v2533
    %v2536 = vmul.f32 %v2534, 1.442695
    %v2537 = vpow.pop %v2536
    %v2538 = vmul.f32 %v2535, 1.442695
    %v2539 = vpow.pop %v2538
    %v2540 = vpack.c.bf16 %v2537, %v2537
    %v2541 = vpack.c.bf16 %v2539, %v2539
    %v2542 = vld [vmem:[#allocation16] sm:$0xff]
    %v2543 = vld [vmem:[#allocation16 + $0x8] sm:$0xff]
    %v2544 = vld [vmem:[#allocation16 + $0x10] sm:$0xff]
    %v2545 = vld [vmem:[#allocation16 + $0x18] sm:$0xff]
    %v2546 = vld [vmem:[#allocation16 + $0x20] sm:$0xff]
    %v2547 = vld [vmem:[#allocation16 + $0x28] sm:$0xff]
    %v2548 = vld [vmem:[#allocation16 + $0x30] sm:$0xff]
    %v2549 = vld [vmem:[#allocation16 + $0x38] sm:$0xff]
    %v2550 = vld [vmem:[#allocation16 + $0x40] sm:$0xff]
    %v2551 = vld [vmem:[#allocation16 + $0x48] sm:$0xff]
    %v2552 = vld [vmem:[#allocation16 + $0x50] sm:$0xff]
    %v2553 = vld [vmem:[#allocation16 + $0x58] sm:$0xff]
    %v2554 = vld [vmem:[#allocation16 + $0x60] sm:$0xff]
    %v2555 = vld [vmem:[#allocation16 + $0x68] sm:$0xff]
    %v2556 = vld [vmem:[#allocation16 + $0x70] sm:$0xff]
    %v2557 = vld [vmem:[#allocation16 + $0x78] sm:$0xff]
    %v2558 = vld [vmem:[#allocation16 + $0x80] sm:$0xff]
    %v2559 = vld [vmem:[#allocation16 + $0x88] sm:$0xff]
    %v2560 = vld [vmem:[#allocation16 + $0x90] sm:$0xff]
    %v2561 = vld [vmem:[#allocation16 + $0x98] sm:$0xff]
    %v2562 = vld [vmem:[#allocation16 + $0xa0] sm:$0xff]
    %v2563 = vld [vmem:[#allocation16 + $0xa8] sm:$0xff]
    %v2564 = vld [vmem:[#allocation16 + $0xb0] sm:$0xff]
    %v2565 = vld [vmem:[#allocation16 + $0xb8] sm:$0xff]
    %v2566 = vld [vmem:[#allocation16 + $0xc0] sm:$0xff]
    %v2567 = vld [vmem:[#allocation16 + $0xc8] sm:$0xff]
    %v2568 = vld [vmem:[#allocation16 + $0xd0] sm:$0xff]
    %v2569 = vld [vmem:[#allocation16 + $0xd8] sm:$0xff]
    %v2570 = vld [vmem:[#allocation16 + $0xe0] sm:$0xff]
    %v2571 = vld [vmem:[#allocation16 + $0xe8] sm:$0xff]
    %v2572 = vld [vmem:[#allocation16 + $0xf0] sm:$0xff]
    %v2573 = vld [vmem:[#allocation16 + $0xf8] sm:$0xff]
    %v2606 = vunpack.c.l.b16 %v2542
    %v2607 = vunpack.c.h.b16 %v2542
    %v2608 = vunpack.c.l.b16 %v2543
    %v2609 = vunpack.c.h.b16 %v2543
    %v2610 = vunpack.c.l.b16 %v2544
    %v2611 = vunpack.c.h.b16 %v2544
    %v2612 = vunpack.c.l.b16 %v2545
    %v2613 = vunpack.c.h.b16 %v2545
    %v2614 = vunpack.c.l.b16 %v2546
    %v2615 = vunpack.c.h.b16 %v2546
    %v2616 = vunpack.c.l.b16 %v2547
    %v2617 = vunpack.c.h.b16 %v2547
    %v2618 = vunpack.c.l.b16 %v2548
    %v2619 = vunpack.c.h.b16 %v2548
    %v2620 = vunpack.c.l.b16 %v2549
    %v2621 = vunpack.c.h.b16 %v2549
    %v2622 = vunpack.c.l.b16 %v2550
    %v2623 = vunpack.c.h.b16 %v2550
    %v2624 = vunpack.c.l.b16 %v2551
    %v2625 = vunpack.c.h.b16 %v2551
    %v2626 = vunpack.c.l.b16 %v2552
    %v2627 = vunpack.c.h.b16 %v2552
    %v2628 = vunpack.c.l.b16 %v2553
    %v2629 = vunpack.c.h.b16 %v2553
    %v2630 = vunpack.c.l.b16 %v2554
    %v2631 = vunpack.c.h.b16 %v2554
    %v2632 = vunpack.c.l.b16 %v2555
    %v2633 = vunpack.c.h.b16 %v2555
    %v2634 = vunpack.c.l.b16 %v2556
    %v2635 = vunpack.c.h.b16 %v2556
    %v2636 = vunpack.c.l.b16 %v2557
    %v2637 = vunpack.c.h.b16 %v2557
    %v2638 = vunpack.c.l.b16 %v2558
    %v2639 = vunpack.c.h.b16 %v2558
    %v2640 = vunpack.c.l.b16 %v2559
    %v2641 = vunpack.c.h.b16 %v2559
    %v2642 = vunpack.c.l.b16 %v2560
    %v2643 = vunpack.c.h.b16 %v2560
    %v2644 = vunpack.c.l.b16 %v2561
    %v2645 = vunpack.c.h.b16 %v2561
    %v2646 = vunpack.c.l.b16 %v2562
    %v2647 = vunpack.c.h.b16 %v2562
    %v2648 = vunpack.c.l.b16 %v2563
    %v2649 = vunpack.c.h.b16 %v2563
    %v2650 = vunpack.c.l.b16 %v2564
    %v2651 = vunpack.c.h.b16 %v2564
    %v2652 = vunpack.c.l.b16 %v2565
    %v2653 = vunpack.c.h.b16 %v2565
    %v2654 = vunpack.c.l.b16 %v2566
    %v2655 = vunpack.c.h.b16 %v2566
    %v2656 = vunpack.c.l.b16 %v2567
    %v2657 = vunpack.c.h.b16 %v2567
    %v2658 = vunpack.c.l.b16 %v2568
    %v2659 = vunpack.c.h.b16 %v2568
    %v2660 = vunpack.c.l.b16 %v2569
    %v2661 = vunpack.c.h.b16 %v2569
    %v2662 = vunpack.c.l.b16 %v2570
    %v2663 = vunpack.c.h.b16 %v2570
    %v2664 = vunpack.c.l.b16 %v2571
    %v2665 = vunpack.c.h.b16 %v2571
    %v2666 = vunpack.c.l.b16 %v2572
    %v2667 = vunpack.c.h.b16 %v2572
    %v2668 = vunpack.c.l.b16 %v2573
    %v2669 = vunpack.c.h.b16 %v2573
    %v2670 = vpack.c.b16 %v2608, %v2606
    %v2671 = vpack.c.b16 %v2609, %v2607
    %v2672 = vpack.c.b16 %v2612, %v2610
    %v2673 = vpack.c.b16 %v2613, %v2611
    %v2674 = vpack.c.b16 %v2616, %v2614
    %v2675 = vpack.c.b16 %v2617, %v2615
    %v2676 = vpack.c.b16 %v2620, %v2618
    %v2677 = vpack.c.b16 %v2621, %v2619
    %v2678 = vpack.c.b16 %v2624, %v2622
    %v2679 = vpack.c.b16 %v2625, %v2623
    %v2680 = vpack.c.b16 %v2628, %v2626
    %v2681 = vpack.c.b16 %v2629, %v2627
    %v2682 = vpack.c.b16 %v2632, %v2630
    %v2683 = vpack.c.b16 %v2633, %v2631
    %v2684 = vpack.c.b16 %v2636, %v2634
    %v2685 = vpack.c.b16 %v2637, %v2635
    %v2686 = vpack.c.b16 %v2640, %v2638
    %v2687 = vpack.c.b16 %v2641, %v2639
    %v2688 = vpack.c.b16 %v2644, %v2642
    %v2689 = vpack.c.b16 %v2645, %v2643
    %v2690 = vpack.c.b16 %v2648, %v2646
    %v2691 = vpack.c.b16 %v2649, %v2647
    %v2692 = vpack.c.b16 %v2652, %v2650
    %v2693 = vpack.c.b16 %v2653, %v2651
    %v2694 = vpack.c.b16 %v2656, %v2654
    %v2695 = vpack.c.b16 %v2657, %v2655
    %v2696 = vpack.c.b16 %v2660, %v2658
    %v2697 = vpack.c.b16 %v2661, %v2659
    %v2698 = vpack.c.b16 %v2664, %v2662
    %v2699 = vpack.c.b16 %v2665, %v2663
    %v2700 = vpack.c.b16 %v2668, %v2666
    %v2701 = vpack.c.b16 %v2669, %v2667
    %2734 = vmatprep.subr.bf16.mxu0 %v2671
    %2735 = vmatpush1.bf16.msra.mxu0 %v2670
    %2736 = vmatprep.subr.bf16.mxu0 %v2673
    %2737 = vmatpush1.bf16.msra.mxu0 %v2672
    %2738 = vmatprep.subr.bf16.mxu0 %v2675
    %2739 = vmatpush1.bf16.msra.mxu0 %v2674
    %2740 = vmatprep.subr.bf16.mxu0 %v2677
    %2741 = vmatpush1.bf16.msra.mxu0 %v2676
    %2742 = vmatprep.subr.bf16.mxu0 %v2679
    %2743 = vmatpush1.bf16.msra.mxu0 %v2678
    %2744 = vmatprep.subr.bf16.mxu0 %v2681
    %2745 = vmatpush1.bf16.msra.mxu0 %v2680
    %2746 = vmatprep.subr.bf16.mxu0 %v2683
    %2747 = vmatpush1.bf16.msra.mxu0 %v2682
    %2748 = vmatprep.subr.bf16.mxu0 %v2685
    %2749 = vmatpush1.bf16.msra.mxu0 %v2684
    %2750 = vmatprep.subr.bf16.mxu0 %v2687
    %2751 = vmatpush1.bf16.msra.mxu0 %v2686
    %2752 = vmatprep.subr.bf16.mxu0 %v2689
    %2753 = vmatpush1.bf16.msra.mxu0 %v2688
    %2754 = vmatprep.subr.bf16.mxu0 %v2691
    %2755 = vmatpush1.bf16.msra.mxu0 %v2690
    %2756 = vmatprep.subr.bf16.mxu0 %v2693
    %2757 = vmatpush1.bf16.msra.mxu0 %v2692
    %2758 = vmatprep.subr.bf16.mxu0 %v2695
    %2759 = vmatpush1.bf16.msra.mxu0 %v2694
    %2760 = vmatprep.subr.bf16.mxu0 %v2697
    %2761 = vmatpush1.bf16.msra.mxu0 %v2696
    %2762 = vmatprep.subr.bf16.mxu0 %v2699
    %2763 = vmatpush1.bf16.msra.mxu0 %v2698
    %2764 = vmatprep.subr.bf16.mxu0 %v2701
    %2765 = vmatpush1.bf16.msra.mxu0 %v2700
    %2766 = vmatprep.mubr.bf16.mxu0 %v2541
    %2767 = vmatmul.mubr.bf16.gmra.mrb[0].mxu0 %v2540
    %v2768 = vpop.f32.mrb[0].mxu0
    %v2769 = vadd.f32 0.0, %v2768
    %v2770 = vpop.f32.mrb[0].mxu0
    %v2771 = vadd.f32 0.0, %v2770
    %v2772 = vpop.f32.mrb[0].mxu0
    %v2773 = vpop.f32.mrb[0].mxu0
    %2774 = vdwg.mxu0
    %v2775 = vrcp.pop %v2769
    %v2776 = vrcp.pop %v2771
    %v2777 = vmul.f32 %v2537, %v2775
    %v2778 = vmul.f32 %v2539, %v2776
    %2779 = vst [vmem:[#allocation17] sm:$0xff] %v2777
    %2780 = vst [vmem:[#allocation17 + $0x8] sm:$0xff] %v2778
    // Predicated region
    $region98: #{tpu_custom_call.1} parent=1 // pred_check
      _
    $region99: #{tpu_custom_call.1} parent=1 // pred_check_branch
      %2782 = sbr.rel (0) target = $region101
    $region100: #{tpu_custom_call.1} parent=1 // pred_region
      %s2784 = ssub.s32 256, 256
      %2785 = vsyncadd [#allocation4], %s2784
      %s2787 = sshll.u32 [#allocation17], 4
      %s2788 = int_to_ptr.vmem [resolvable:$true] %s2787
      %2790 = dma.vmem_to_hbm [thread:$0]  %s2788, 256, %s15, [#allocation4]
    $region101: #{tpu_custom_call.1} parent=1 // pred_fallthru
      _
    // Predicated region
    $region102: #{tpu_custom_call.1} parent=1 // pred_check
      _
    $region103: #{tpu_custom_call.1} parent=1 // pred_check_branch
      %2792 = sbr.rel (0) target = $region105
    $region104: #{tpu_custom_call.1} parent=1 // pred_region
      %s2794 = ssub.s32 128, 128
      %2795 = vsyncadd [#allocation19], %s2794
      %s2797 = sshll.u32 [#allocation18], 4
      %s2798 = int_to_ptr.vmem [resolvable:$true] %s2797
      %2800 = dma.vmem_to_hbm [thread:$0]  %s2798, 128, %s16, [#allocation19]
    $region105: #{tpu_custom_call.1} parent=1 // pred_fallthru
      _
    // Predicated region
    $region106: #{tpu_custom_call.1} parent=1 // pred_check
      _
    $region107: #{tpu_custom_call.1} parent=1 // pred_check_branch
      %2802 = sbr.rel (0) target = $region109
    $region108: #{tpu_custom_call.1} parent=1 // pred_region
      %2803 = dma.done [#allocation4], 256
    $region109: #{tpu_custom_call.1} parent=1 // pred_fallthru
      _
    // Predicated region
    $region110: #{tpu_custom_call.1} parent=1 // pred_check
      _
    $region111: #{tpu_custom_call.1} parent=1 // pred_check_branch
      %2805 = sbr.rel (0) target = $region113
    $region112: #{tpu_custom_call.1} parent=1 // pred_region
      %2806 = dma.done [#allocation19], 128
    $region113: #{tpu_custom_call.1} parent=1 // pred_fallthru
      _
    %2807 = vsyncpa [#allocation3], 1
    %2808 = vsyncpa [#allocation6], 1
    %2809 = vsyncpa [#allocation9], 1
    %2810 = vsyncpa [#allocation12], 1
    %2811 = vsyncpa [#allocation15], 1
    %2812 = vsyncpa [#allocation4], 1
    %2813 = vsyncpa [#allocation19], 1

</llo_original>
